<compile_context>
chip_gen: v7x
topology: tpu7x:2x2x1
jax: 0.10.0
libtpu: 0.0.40
codegen_flags: <defaults>
</compile_context>

<pallas_src>
import functools

import jax
import jax.numpy as jnp
from jax import lax
from jax.experimental import pallas as pl
from jax.experimental.pallas import tpu as pltpu

BETA = 0.9
THRESHOLD = 1.0
LANE = 128
SUBLANE = 8


def _round_up(x, m):
    return (x + m - 1) // m * m


def _vmem_capacity_bytes():
    """Physical per-core VMEM; conservative fallback if the query fails."""
    try:
        return int(pltpu.get_tpu_info().vmem_capacity_bytes)
    except Exception:
        return 64 * 1024 * 1024  # v7x per-TC VMEM (smallest current part)


def _pick_col_tile(total, b_tile, max_lanes=512, max_carry_elems=16 * 1024):
    """Largest multiple of 128 that divides `total`, is <= max_lanes, and keeps
    the serial-recurrence carry (b_tile x tile f32) within ~16 vregs."""
    best = 128
    for t in range(128, min(total, max_lanes) + 1, 128):
        if total % t == 0 and b_tile * t <= max_carry_elems:
            best = t
    return min(best, total)


def _make_snn_kernel(tc, b_tile, hp, op, h_tile, o_tile, unroll):
    """Kernel closure with static chunk/tile sizes baked in."""

    def kernel(x_ref, w1_ref, b1_ref, w2_ref, b2_ref,
               spk_out_ref, mem_out_ref,
               mem1_ref, mem2_ref, buf1_ref):
        # init_leaky(): zero membranes at the first time chunk of every
        # batch tile (time is grid axis 1).
        @pl.when(pl.program_id(1) == 0)
        def _init():
            mem1_ref[...] = jnp.zeros_like(mem1_ref)
            mem2_ref[...] = jnp.zeros_like(mem2_ref)

        # ---- fc1 for the whole time chunk: one MXU matmul, bias added once
        #      per chunk (not per timestep). ----
        buf1_ref[...] = (
            jnp.dot(x_ref[...], w1_ref[...],
                    preferred_element_type=jnp.float32)
            + b1_ref[...])

        # ---- serial LIF recurrence over the chunk, tiled over lanes so the
        #      carry stays in registers.  reset_t = (mem_{t-1} > thr) is
        #      recomputed each step (cheaper than carrying the spike). ----
        def lif_sweep(buf_ref, mem_ref, col, width, spk_ref=None):
            def step(t, mem):
                r = pl.multiple_of(t * b_tile, b_tile)
                cur = buf_ref[pl.ds(r, b_tile), pl.ds(col, width)]
                reset = (mem > THRESHOLD).astype(jnp.float32)
                mem = BETA * mem + cur - reset * THRESHOLD
                spk = (mem > THRESHOLD).astype(jnp.float32)
                if spk_ref is None:
                    # layer 1: overwrite cur1 with spk1 in place
                    buf_ref[pl.ds(r, b_tile), pl.ds(col, width)] = spk
                else:
                    # layer 2: keep the membrane trace, emit spikes separately
                    buf_ref[pl.ds(r, b_tile), pl.ds(col, width)] = mem
                    spk_ref[pl.ds(r, b_tile), pl.ds(col, width)] = (
                        spk.astype(spk_ref.dtype))
                return mem

            mem0 = mem_ref[:, pl.ds(col, width)]
            mem_n = lax.fori_loop(0, tc, step, mem0, unroll=unroll)
            mem_ref[:, pl.ds(col, width)] = mem_n

        # LIF1 over the hidden dimension, h_tile lanes at a time.
        for h0 in range(0, hp, h_tile):
            lif_sweep(buf1_ref, mem1_ref, h0, h_tile)

        # ---- fc2 on the whole chunk of spikes: one MXU matmul, staged
        #      directly in the lane-dense membrane output block. ----
        mem_out_ref[...] = (
            jnp.dot(buf1_ref[...].astype(w2_ref.dtype), w2_ref[...],
                    preferred_element_type=jnp.float32)
            + b2_ref[...])

        # LIF2 over the (padded) output dimension.
        for o0 in range(0, op, o_tile):
            lif_sweep(mem_out_ref, mem2_ref, o0, o_tile, spk_ref=spk_out_ref)

    return kernel


def snn_forward(x, w1, b1, w2, b2, *, compute_dtype=jnp.bfloat16,
                max_tc=128, vmem_budget_bytes=None):
    """x: (T, B, I); w1: (I, H); b1: (1, H); w2: (H, O); b2: (1, O).

    Returns (spike_train, membrane_train), each (T, B, O) float32.
    compute_dtype controls the x/W1/W2 matmul dtype (default bfloat16,
    f32 accumulation); the LIF recurrence always stays float32.
    """
    T, B, I = x.shape
    H = w1.shape[1]
    O = w2.shape[1]

    # ---- zero-pad to TPU-friendly shapes (lane=128, sublane=8) ----
    Bp = _round_up(B, SUBLANE)
    Ip = _round_up(I, LANE)
    Hp = _round_up(H, LANE)
    Op = _round_up(O, LANE)        # lane-dense outputs (10 -> 128)

    in_dt = jnp.dtype(compute_dtype)
    in_sz = in_dt.itemsize

    # Batch tiles: 2 when the padded batch splits cleanly into sublane-aligned
    # halves (uses both TensorCores on megacore parts via the "parallel" grid
    # axis; purely sequential and near-free on single-core chips).
    n_bt = 2 if (Bp >= 16 and Bp % 16 == 0) else 1
    b_tile = Bp // n_bt

    # ---- per-generation VMEM budgeting ----
    cap = _vmem_capacity_bytes()
    if vmem_budget_bytes is None:
        vmem_budget_bytes = int(0.45 * cap)
    budget = min(int(vmem_budget_bytes), int(0.6 * cap))

    def need_bytes(rows):
        return (2 * rows * Ip * in_sz                 # x chunk (double buffered)
                + rows * Hp * 4                       # cur1/spk1 chunk scratch
                + 2 * rows * Op * 2                   # spike out (bf16, dbl buf)
                + 2 * rows * Op * 4                   # membrane out (f32, dbl buf)
                + 2 * (Ip * Hp + Hp * Op) * in_sz     # weights (dbl buffered)
                + 2 * 2 * (Hp + Op) * 4               # biases
                + (b_tile * Hp + b_tile * Op) * 4)    # membrane state

    # ---- pick the time-chunk size: large MXU M (>=256-512 rows), minimal
    #      padded-timestep waste, within the VMEM budget. ----
    best_tc, best_key = 1, None
    for cand in range(1, max_tc + 1):
        rows_c = cand * b_tile
        if need_bytes(rows_c) > budget:
            break
        t_pad = _round_up(T, cand)
        score = (min(rows_c, 512) / 512.0) * (T / t_pad)
        key = (score, -t_pad, cand)
        if best_key is None or key > best_key:
            best_tc, best_key = cand, key
    tc = best_tc
    rows = tc * b_tile
    Tp = _round_up(T, tc)          # pad T instead of forcing tc | T
    n_chunks = Tp // tc

    h_tile = _pick_col_tile(Hp, b_tile)
    o_tile = _pick_col_tile(Op, b_tile)
    if tc <= 32:
        unroll = True
    else:
        unroll = next(u for u in (8, 4, 2, 1) if tc % u == 0)

    # ---- pad + rearrange x to (batch_tile, time, row, lane) flat 2-D slab ----
    xp = jnp.zeros((Tp, Bp, Ip), in_dt).at[:T, :B, :I].set(x.astype(in_dt))
    x2d = (xp.reshape(Tp, n_bt, b_tile, Ip)
             .transpose(1, 0, 2, 3)
             .reshape(n_bt * Tp * b_tile, Ip))

    w1p = jnp.zeros((Ip, Hp), in_dt).at[:I, :H].set(w1.astype(in_dt))
    b1p = jnp.zeros((1, Hp), jnp.float32).at[:, :H].set(b1.astype(jnp.float32))
    w2p = jnp.zeros((Hp, Op), in_dt).at[:H, :O].set(w2.astype(in_dt))
    b2p = jnp.zeros((1, Op), jnp.float32).at[:, :O].set(b2.astype(jnp.float32))

    kernel = _make_snn_kernel(tc, b_tile, Hp, Op, h_tile, o_tile, unroll)

    need = need_bytes(rows)
    # Always set the scoped-VMEM limit (v5e default is only 16 MiB) and cap it
    # below the physical per-core VMEM of the current generation.
    vmem_limit = int(min(max(need + (8 << 20), 32 << 20), 0.85 * cap))
    compiler_params = pltpu.CompilerParams(
        dimension_semantics=("parallel", "arbitrary"),
        vmem_limit_bytes=vmem_limit)

    row_map = lambda bt, c, n=n_chunks: (bt * n + c, 0)
    const_map = lambda bt, c: (0, 0)

    # NOTE: W1/W2/b1/b2 have constant index maps; single-buffering them
    # (pipeline_mode=pl.Buffered(1)) would free a few MiB of VMEM but is
    # omitted for portability across jaxlib versions.
    spk2d, mem2d = pl.pallas_call(
        kernel,
        out_shape=(
            jax.ShapeDtypeStruct((n_bt * Tp * b_tile, Op), jnp.bfloat16),
            jax.ShapeDtypeStruct((n_bt * Tp * b_tile, Op), jnp.float32),
        ),
        grid_spec=pltpu.PrefetchScalarGridSpec(
            num_scalar_prefetch=0,
            grid=(n_bt, n_chunks),
            in_specs=[
                pl.BlockSpec((rows, Ip), row_map),     # x time-chunk
                pl.BlockSpec((Ip, Hp), const_map),     # W1 (resident)
                pl.BlockSpec((1, Hp), const_map),      # b1
                pl.BlockSpec((Hp, Op), const_map),     # W2 (resident)
                pl.BlockSpec((1, Op), const_map),      # b2
            ],
            out_specs=[
                pl.BlockSpec((rows, Op), row_map),     # spike train (bf16)
                pl.BlockSpec((rows, Op), row_map),     # membrane train (f32)
            ],
            scratch_shapes=[
                pltpu.VMEM((b_tile, Hp), jnp.float32),   # mem1 (persists over t)
                pltpu.VMEM((b_tile, Op), jnp.float32),   # mem2 (persists over t)
                pltpu.VMEM((rows, Hp), jnp.float32),     # cur1 -> spk1 buffer
            ],
        ),
        compiler_params=compiler_params,
    )(x2d, w1p, b1p, w2p, b2p)

    def unflatten(y):
        return (y.reshape(n_bt, Tp, b_tile, Op)
                 .transpose(1, 0, 2, 3)
                 .reshape(Tp, Bp, Op)[:T, :B, :O])

    spk = unflatten(spk2d).astype(jnp.float32)
    mem = unflatten(mem2d)
    return spk, mem


def snn_ref(x, w1, b1, w2, b2, compute_dtype=jnp.float32):
    """Pure-JAX reference of the PyTorch forward (lax.scan over time)."""
    cd = jnp.dtype(compute_dtype)
    B = x.shape[1]
    H = w1.shape[1]
    O = w2.shape[1]
    w1c = w1.astype(cd)
    w2c = w2.astype(cd)
    b1f = b1.astype(jnp.float32)
    b2f = b2.astype(jnp.float32)

    def step(carry, xt):
        mem1, mem2 = carry
        cur1 = jnp.dot(xt.astype(cd), w1c,
                       preferred_element_type=jnp.float32) + b1f
        reset1 = (mem1 > THRESHOLD).astype(jnp.float32)
        mem1 = BETA * mem1 + cur1 - reset1 * THRESHOLD
        spk1 = (mem1 > THRESHOLD).astype(jnp.float32)
        cur2 = jnp.dot(spk1.astype(cd), w2c,
                       preferred_element_type=jnp.float32) + b2f
        reset2 = (mem2 > THRESHOLD).astype(jnp.float32)
        mem2 = BETA * mem2 + cur2 - reset2 * THRESHOLD
        spk2 = (mem2 > THRESHOLD).astype(jnp.float32)
        return (mem1, mem2), (spk2, mem2)

    init = (jnp.zeros((B, H), jnp.float32), jnp.zeros((B, O), jnp.float32))
    _, (spks, mems) = jax.lax.scan(step, init, x)
    return spks, mems


if __name__ == "__main__":
    # Small, deterministic stand-ins for (timesteps=100, 784, 1000, 10).
    T, B = 16, 8
    NUM_INPUTS, NUM_HIDDEN, NUM_OUTPUTS = 128, 256, 10   # O pads 10 -> 128

    key = jax.random.PRNGKey(0)
    kx, kw1, kb1, kw2, kb2 = jax.random.split(key, 5)

    x = jax.random.normal(kx, (T, B, NUM_INPUTS), dtype=jnp.float32)

    # PyTorch nn.Linear default init: U(-1/sqrt(fan_in), 1/sqrt(fan_in)).
    s1 = 1.0 / (NUM_INPUTS ** 0.5)
    s2 = 1.0 / (NUM_HIDDEN ** 0.5)
    w1 = jax.random.uniform(kw1, (NUM_INPUTS, NUM_HIDDEN),
                            minval=-s1, maxval=s1, dtype=jnp.float32)
    b1 = jax.random.uniform(kb1, (1, NUM_HIDDEN),
                            minval=-s1, maxval=s1, dtype=jnp.float32)
    w2 = jax.random.uniform(kw2, (NUM_HIDDEN, NUM_OUTPUTS),
                            minval=-s2, maxval=s2, dtype=jnp.float32)
    b2 = jax.random.uniform(kb2, (1, NUM_OUTPUTS),
                            minval=-s2, maxval=s2, dtype=jnp.float32)

    # --- f32 compute path: strict validation against the f32 reference ---
    fwd_f32 = jax.jit(functools.partial(snn_forward, compute_dtype=jnp.float32))
    spk_train, mem_train = jax.block_until_ready(fwd_f32(x, w1, b1, w2, b2))
    spk_ref, mem_ref = snn_ref(x, w1, b1, w2, b2)

    assert spk_train.shape == (T, B, NUM_OUTPUTS)
    assert mem_train.shape == (T, B, NUM_OUTPUTS)
    assert jnp.allclose(mem_train, mem_ref, atol=5e-3), "membrane mismatch (f32)"
    # Spikes are binary threshold crossings; validate via mismatch rate so a
    # rare at-threshold fp flip can't fail the run.
    f32_spk_err = float(jnp.mean(spk_train != spk_ref))
    assert f32_spk_err < 5e-3, f"spike mismatch rate (f32) {f32_spk_err}"

    # --- bf16 compute path (performance default): loose validation ---
    fwd_bf16 = jax.jit(snn_forward)     # compute_dtype defaults to bfloat16
    spk_b, mem_b = jax.block_until_ready(fwd_bf16(x, w1, b1, w2, b2))
    spk_rb, mem_rb = snn_ref(x, w1, b1, w2, b2, compute_dtype=jnp.bfloat16)
    bf16_spk_err = float(jnp.mean(spk_b != spk_rb))
    bf16_mem_err = float(jnp.mean(jnp.abs(mem_b - mem_rb)))
    assert bf16_spk_err < 2e-2, f"spike mismatch rate (bf16) {bf16_spk_err}"
    assert bf16_mem_err < 2e-2, f"membrane mean error (bf16) {bf16_mem_err}"

    print("KERNEL_OK")
</pallas_src>

<mosaic_0001>
module attributes {stable_mosaic.version = 11 : i64} {
  func.func @kernel(%arg0: i32, %arg1: i32, %arg2: memref<128x128xf32, #tpu.memory_space<vmem>>, %arg3: memref<128x256xf32, #tpu.memory_space<vmem>>, %arg4: memref<1x256xf32, #tpu.memory_space<vmem>>, %arg5: memref<256x128xf32, #tpu.memory_space<vmem>>, %arg6: memref<1x128xf32, #tpu.memory_space<vmem>>, %arg7: memref<128x128xbf16, #tpu.memory_space<vmem>>, %arg8: memref<128x128xf32, #tpu.memory_space<vmem>>, %arg9: memref<8x256xf32, #tpu.memory_space<vmem>>, %arg10: memref<8x128xf32, #tpu.memory_space<vmem>>, %arg11: memref<128x256xf32, #tpu.memory_space<vmem>>) attributes {dimension_semantics = [#tpu.dimension_semantics<parallel>, #tpu.dimension_semantics<arbitrary>], iteration_bounds = array<i64: 1, 1>, scalar_prefetch = 0 : i64, scratch_operands = 3 : i64, tpu.core_type = #tpu.core_type<tc>, window_params = [{transform_indices = @transform_0, window_bounds = array<i64: 128, 128>}, {pipeline_mode = #tpu.pipeline_mode<synchronous>, transform_indices = @transform_1, window_bounds = array<i64: 128, 256>}, {pipeline_mode = #tpu.pipeline_mode<synchronous>, transform_indices = @transform_2, window_bounds = array<i64: 1, 256>}, {pipeline_mode = #tpu.pipeline_mode<synchronous>, transform_indices = @transform_3, window_bounds = array<i64: 256, 128>}, {pipeline_mode = #tpu.pipeline_mode<synchronous>, transform_indices = @transform_4, window_bounds = array<i64: 1, 128>}, {transform_indices = @transform_5, window_bounds = array<i64: 128, 128>}, {transform_indices = @transform_6, window_bounds = array<i64: 128, 128>}]} {
    %c0_i32 = arith.constant 0 : i32
    %0 = arith.cmpi eq, %arg1, %c0_i32 : i32
    %1 = arith.extui %0 : i1 to i32
    %c0_i32_0 = arith.constant 0 : i32
    %2 = arith.cmpi ne, %1, %c0_i32_0 : i32
    scf.if %2 {
      %cst_283 = arith.constant 0.000000e+00 : f32
      %709 = vector.broadcast %cst_283 : f32 to vector<8x256xf32>
      %c0_284 = arith.constant 0 : index
      %c0_285 = arith.constant 0 : index
      %710 = vector.load %arg9[%c0_284, %c0_285] : memref<8x256xf32, #tpu.memory_space<vmem>>, vector<8x256xf32>
      tpu.vector_store %arg9[%c0_284, %c0_285], %709 {strides = array<i32>} : memref<8x256xf32, #tpu.memory_space<vmem>>, vector<8x256xf32>,
      %cst_286 = arith.constant 0.000000e+00 : f32
      %711 = vector.broadcast %cst_286 : f32 to vector<8x128xf32>
      %c0_287 = arith.constant 0 : index
      %c0_288 = arith.constant 0 : index
      %712 = vector.load %arg10[%c0_287, %c0_288] : memref<8x128xf32, #tpu.memory_space<vmem>>, vector<8x128xf32>
      tpu.vector_store %arg10[%c0_287, %c0_288], %711 {strides = array<i32>} : memref<8x128xf32, #tpu.memory_space<vmem>>, vector<8x128xf32>,
    } else {
    }
    %c0 = arith.constant 0 : index
    %c0_1 = arith.constant 0 : index
    %3 = vector.load %arg2[%c0, %c0_1] : memref<128x128xf32, #tpu.memory_space<vmem>>, vector<128x128xf32>
    %c0_2 = arith.constant 0 : index
    %c0_3 = arith.constant 0 : index
    %4 = vector.load %arg3[%c0_2, %c0_3] : memref<128x256xf32, #tpu.memory_space<vmem>>, vector<128x256xf32>
    %cst = arith.constant dense<0.000000e+00> : vector<128x256xf32>
    %5 = tpu.matmul %3, %4, %cst {dimension_numbers = #tpu.dot_dimension_numbers<[1], [0], [0], [1], [0, 0, 1, 1], [], []>} : vector<128x128xf32>, vector<128x256xf32>, vector<128x256xf32> -> vector<128x256xf32>
    %c0_4 = arith.constant 0 : index
    %c0_5 = arith.constant 0 : index
    %6 = vector.load %arg4[%c0_4, %c0_5] : memref<1x256xf32, #tpu.memory_space<vmem>>, vector<1x256xf32>
    %7 = vector.broadcast %6 : vector<1x256xf32> to vector<128x256xf32>
    %8 = arith.addf %5, %7 : vector<128x256xf32>
    %c0_6 = arith.constant 0 : index
    %c0_7 = arith.constant 0 : index
    %9 = vector.load %arg11[%c0_6, %c0_7] : memref<128x256xf32, #tpu.memory_space<vmem>>, vector<128x256xf32>
    tpu.vector_store %arg11[%c0_6, %c0_7], %8 {strides = array<i32>} : memref<128x256xf32, #tpu.memory_space<vmem>>, vector<128x256xf32>,
    %c0_8 = arith.constant 0 : index
    %c0_9 = arith.constant 0 : index
    %10 = vector.load %arg9[%c0_8, %c0_9] : memref<8x256xf32, #tpu.memory_space<vmem>>, vector<8x256xf32>
    %c0_i32_10 = arith.constant 0 : i32
    %c8_i32 = arith.constant 8 : i32
    %11 = arith.muli %c0_i32_10, %c8_i32 : i32
    %12 = tpu.assume_multiple %11, 8 : i32
    %13 = arith.index_cast %12 : i32 to index
    %c0_11 = arith.constant 0 : index
    %14 = vector.load %arg11[%13, %c0_11] : memref<128x256xf32, #tpu.memory_space<vmem>>, vector<8x256xf32>
    %cst_12 = arith.constant 1.000000e+00 : f32
    %15 = vector.broadcast %cst_12 : f32 to vector<8x256xf32>
    %16 = arith.cmpf ogt, %10, %15 : vector<8x256xf32>
    %17 = arith.extui %16 : vector<8x256xi1> to vector<8x256xi32>
    %18 = arith.sitofp %17 : vector<8x256xi32> to vector<8x256xf32>
    %cst_13 = arith.constant 0.899999976 : f32
    %19 = vector.broadcast %cst_13 : f32 to vector<8x256xf32>
    %20 = arith.mulf %19, %10 : vector<8x256xf32>
    %21 = arith.addf %20, %14 : vector<8x256xf32>
    %cst_14 = arith.constant 1.000000e+00 : f32
    %22 = vector.broadcast %cst_14 : f32 to vector<8x256xf32>
    %23 = arith.mulf %18, %22 : vector<8x256xf32>
    %24 = arith.subf %21, %23 : vector<8x256xf32>
    %cst_15 = arith.constant 1.000000e+00 : f32
    %25 = vector.broadcast %cst_15 : f32 to vector<8x256xf32>
    %26 = arith.cmpf ogt, %24, %25 : vector<8x256xf32>
    %27 = arith.extui %26 : vector<8x256xi1> to vector<8x256xi32>
    %28 = arith.sitofp %27 : vector<8x256xi32> to vector<8x256xf32>
    %29 = arith.index_cast %12 : i32 to index
    %c0_16 = arith.constant 0 : index
    %30 = vector.load %arg11[%29, %c0_16] : memref<128x256xf32, #tpu.memory_space<vmem>>, vector<8x256xf32>
    tpu.vector_store %arg11[%29, %c0_16], %28 {strides = array<i32>} : memref<128x256xf32, #tpu.memory_space<vmem>>, vector<8x256xf32>,
    %c1_i32 = arith.constant 1 : i32
    %c8_i32_17 = arith.constant 8 : i32
    %31 = arith.muli %c1_i32, %c8_i32_17 : i32
    %32 = tpu.assume_multiple %31, 8 : i32
    %33 = arith.index_cast %32 : i32 to index
    %c0_18 = arith.constant 0 : index
    %34 = vector.load %arg11[%33, %c0_18] : memref<128x256xf32, #tpu.memory_space<vmem>>, vector<8x256xf32>
    %cst_19 = arith.constant 1.000000e+00 : f32
    %35 = vector.broadcast %cst_19 : f32 to vector<8x256xf32>
    %36 = arith.cmpf ogt, %24, %35 : vector<8x256xf32>
    %37 = arith.extui %36 : vector<8x256xi1> to vector<8x256xi32>
    %38 = arith.sitofp %37 : vector<8x256xi32> to vector<8x256xf32>
    %cst_20 = arith.constant 0.899999976 : f32
    %39 = vector.broadcast %cst_20 : f32 to vector<8x256xf32>
    %40 = arith.mulf %39, %24 : vector<8x256xf32>
    %41 = arith.addf %40, %34 : vector<8x256xf32>
    %cst_21 = arith.constant 1.000000e+00 : f32
    %42 = vector.broadcast %cst_21 : f32 to vector<8x256xf32>
    %43 = arith.mulf %38, %42 : vector<8x256xf32>
    %44 = arith.subf %41, %43 : vector<8x256xf32>
    %cst_22 = arith.constant 1.000000e+00 : f32
    %45 = vector.broadcast %cst_22 : f32 to vector<8x256xf32>
    %46 = arith.cmpf ogt, %44, %45 : vector<8x256xf32>
    %47 = arith.extui %46 : vector<8x256xi1> to vector<8x256xi32>
    %48 = arith.sitofp %47 : vector<8x256xi32> to vector<8x256xf32>
    %49 = arith.index_cast %32 : i32 to index
    %c0_23 = arith.constant 0 : index
    %50 = vector.load %arg11[%49, %c0_23] : memref<128x256xf32, #tpu.memory_space<vmem>>, vector<8x256xf32>
    tpu.vector_store %arg11[%49, %c0_23], %48 {strides = array<i32>} : memref<128x256xf32, #tpu.memory_space<vmem>>, vector<8x256xf32>,
    %c2_i32 = arith.constant 2 : i32
    %c8_i32_24 = arith.constant 8 : i32
    %51 = arith.muli %c2_i32, %c8_i32_24 : i32
    %52 = tpu.assume_multiple %51, 8 : i32
    %53 = arith.index_cast %52 : i32 to index
    %c0_25 = arith.constant 0 : index
    %54 = vector.load %arg11[%53, %c0_25] : memref<128x256xf32, #tpu.memory_space<vmem>>, vector<8x256xf32>
    %cst_26 = arith.constant 1.000000e+00 : f32
    %55 = vector.broadcast %cst_26 : f32 to vector<8x256xf32>
    %56 = arith.cmpf ogt, %44, %55 : vector<8x256xf32>
    %57 = arith.extui %56 : vector<8x256xi1> to vector<8x256xi32>
    %58 = arith.sitofp %57 : vector<8x256xi32> to vector<8x256xf32>
    %cst_27 = arith.constant 0.899999976 : f32
    %59 = vector.broadcast %cst_27 : f32 to vector<8x256xf32>
    %60 = arith.mulf %59, %44 : vector<8x256xf32>
    %61 = arith.addf %60, %54 : vector<8x256xf32>
    %cst_28 = arith.constant 1.000000e+00 : f32
    %62 = vector.broadcast %cst_28 : f32 to vector<8x256xf32>
    %63 = arith.mulf %58, %62 : vector<8x256xf32>
    %64 = arith.subf %61, %63 : vector<8x256xf32>
    %cst_29 = arith.constant 1.000000e+00 : f32
    %65 = vector.broadcast %cst_29 : f32 to vector<8x256xf32>
    %66 = arith.cmpf ogt, %64, %65 : vector<8x256xf32>
    %67 = arith.extui %66 : vector<8x256xi1> to vector<8x256xi32>
    %68 = arith.sitofp %67 : vector<8x256xi32> to vector<8x256xf32>
    %69 = arith.index_cast %52 : i32 to index
    %c0_30 = arith.constant 0 : index
    %70 = vector.load %arg11[%69, %c0_30] : memref<128x256xf32, #tpu.memory_space<vmem>>, vector<8x256xf32>
    tpu.vector_store %arg11[%69, %c0_30], %68 {strides = array<i32>} : memref<128x256xf32, #tpu.memory_space<vmem>>, vector<8x256xf32>,
    %c3_i32 = arith.constant 3 : i32
    %c8_i32_31 = arith.constant 8 : i32
    %71 = arith.muli %c3_i32, %c8_i32_31 : i32
    %72 = tpu.assume_multiple %71, 8 : i32
    %73 = arith.index_cast %72 : i32 to index
    %c0_32 = arith.constant 0 : index
    %74 = vector.load %arg11[%73, %c0_32] : memref<128x256xf32, #tpu.memory_space<vmem>>, vector<8x256xf32>
    %cst_33 = arith.constant 1.000000e+00 : f32
    %75 = vector.broadcast %cst_33 : f32 to vector<8x256xf32>
    %76 = arith.cmpf ogt, %64, %75 : vector<8x256xf32>
    %77 = arith.extui %76 : vector<8x256xi1> to vector<8x256xi32>
    %78 = arith.sitofp %77 : vector<8x256xi32> to vector<8x256xf32>
    %cst_34 = arith.constant 0.899999976 : f32
    %79 = vector.broadcast %cst_34 : f32 to vector<8x256xf32>
    %80 = arith.mulf %79, %64 : vector<8x256xf32>
    %81 = arith.addf %80, %74 : vector<8x256xf32>
    %cst_35 = arith.constant 1.000000e+00 : f32
    %82 = vector.broadcast %cst_35 : f32 to vector<8x256xf32>
    %83 = arith.mulf %78, %82 : vector<8x256xf32>
    %84 = arith.subf %81, %83 : vector<8x256xf32>
    %cst_36 = arith.constant 1.000000e+00 : f32
    %85 = vector.broadcast %cst_36 : f32 to vector<8x256xf32>
    %86 = arith.cmpf ogt, %84, %85 : vector<8x256xf32>
    %87 = arith.extui %86 : vector<8x256xi1> to vector<8x256xi32>
    %88 = arith.sitofp %87 : vector<8x256xi32> to vector<8x256xf32>
    %89 = arith.index_cast %72 : i32 to index
    %c0_37 = arith.constant 0 : index
    %90 = vector.load %arg11[%89, %c0_37] : memref<128x256xf32, #tpu.memory_space<vmem>>, vector<8x256xf32>
    tpu.vector_store %arg11[%89, %c0_37], %88 {strides = array<i32>} : memref<128x256xf32, #tpu.memory_space<vmem>>, vector<8x256xf32>,
    %c4_i32 = arith.constant 4 : i32
    %c8_i32_38 = arith.constant 8 : i32
    %91 = arith.muli %c4_i32, %c8_i32_38 : i32
    %92 = tpu.assume_multiple %91, 8 : i32
    %93 = arith.index_cast %92 : i32 to index
    %c0_39 = arith.constant 0 : index
    %94 = vector.load %arg11[%93, %c0_39] : memref<128x256xf32, #tpu.memory_space<vmem>>, vector<8x256xf32>
    %cst_40 = arith.constant 1.000000e+00 : f32
    %95 = vector.broadcast %cst_40 : f32 to vector<8x256xf32>
    %96 = arith.cmpf ogt, %84, %95 : vector<8x256xf32>
    %97 = arith.extui %96 : vector<8x256xi1> to vector<8x256xi32>
    %98 = arith.sitofp %97 : vector<8x256xi32> to vector<8x256xf32>
    %cst_41 = arith.constant 0.899999976 : f32
    %99 = vector.broadcast %cst_41 : f32 to vector<8x256xf32>
    %100 = arith.mulf %99, %84 : vector<8x256xf32>
    %101 = arith.addf %100, %94 : vector<8x256xf32>
    %cst_42 = arith.constant 1.000000e+00 : f32
    %102 = vector.broadcast %cst_42 : f32 to vector<8x256xf32>
    %103 = arith.mulf %98, %102 : vector<8x256xf32>
    %104 = arith.subf %101, %103 : vector<8x256xf32>
    %cst_43 = arith.constant 1.000000e+00 : f32
    %105 = vector.broadcast %cst_43 : f32 to vector<8x256xf32>
    %106 = arith.cmpf ogt, %104, %105 : vector<8x256xf32>
    %107 = arith.extui %106 : vector<8x256xi1> to vector<8x256xi32>
    %108 = arith.sitofp %107 : vector<8x256xi32> to vector<8x256xf32>
    %109 = arith.index_cast %92 : i32 to index
    %c0_44 = arith.constant 0 : index
    %110 = vector.load %arg11[%109, %c0_44] : memref<128x256xf32, #tpu.memory_space<vmem>>, vector<8x256xf32>
    tpu.vector_store %arg11[%109, %c0_44], %108 {strides = array<i32>} : memref<128x256xf32, #tpu.memory_space<vmem>>, vector<8x256xf32>,
    %c5_i32 = arith.constant 5 : i32
    %c8_i32_45 = arith.constant 8 : i32
    %111 = arith.muli %c5_i32, %c8_i32_45 : i32
    %112 = tpu.assume_multiple %111, 8 : i32
    %113 = arith.index_cast %112 : i32 to index
    %c0_46 = arith.constant 0 : index
    %114 = vector.load %arg11[%113, %c0_46] : memref<128x256xf32, #tpu.memory_space<vmem>>, vector<8x256xf32>
    %cst_47 = arith.constant 1.000000e+00 : f32
    %115 = vector.broadcast %cst_47 : f32 to vector<8x256xf32>
    %116 = arith.cmpf ogt, %104, %115 : vector<8x256xf32>
    %117 = arith.extui %116 : vector<8x256xi1> to vector<8x256xi32>
    %118 = arith.sitofp %117 : vector<8x256xi32> to vector<8x256xf32>
    %cst_48 = arith.constant 0.899999976 : f32
    %119 = vector.broadcast %cst_48 : f32 to vector<8x256xf32>
    %120 = arith.mulf %119, %104 : vector<8x256xf32>
    %121 = arith.addf %120, %114 : vector<8x256xf32>
    %cst_49 = arith.constant 1.000000e+00 : f32
    %122 = vector.broadcast %cst_49 : f32 to vector<8x256xf32>
    %123 = arith.mulf %118, %122 : vector<8x256xf32>
    %124 = arith.subf %121, %123 : vector<8x256xf32>
    %cst_50 = arith.constant 1.000000e+00 : f32
    %125 = vector.broadcast %cst_50 : f32 to vector<8x256xf32>
    %126 = arith.cmpf ogt, %124, %125 : vector<8x256xf32>
    %127 = arith.extui %126 : vector<8x256xi1> to vector<8x256xi32>
    %128 = arith.sitofp %127 : vector<8x256xi32> to vector<8x256xf32>
    %129 = arith.index_cast %112 : i32 to index
    %c0_51 = arith.constant 0 : index
    %130 = vector.load %arg11[%129, %c0_51] : memref<128x256xf32, #tpu.memory_space<vmem>>, vector<8x256xf32>
    tpu.vector_store %arg11[%129, %c0_51], %128 {strides = array<i32>} : memref<128x256xf32, #tpu.memory_space<vmem>>, vector<8x256xf32>,
    %c6_i32 = arith.constant 6 : i32
    %c8_i32_52 = arith.constant 8 : i32
    %131 = arith.muli %c6_i32, %c8_i32_52 : i32
    %132 = tpu.assume_multiple %131, 8 : i32
    %133 = arith.index_cast %132 : i32 to index
    %c0_53 = arith.constant 0 : index
    %134 = vector.load %arg11[%133, %c0_53] : memref<128x256xf32, #tpu.memory_space<vmem>>, vector<8x256xf32>
    %cst_54 = arith.constant 1.000000e+00 : f32
    %135 = vector.broadcast %cst_54 : f32 to vector<8x256xf32>
    %136 = arith.cmpf ogt, %124, %135 : vector<8x256xf32>
    %137 = arith.extui %136 : vector<8x256xi1> to vector<8x256xi32>
    %138 = arith.sitofp %137 : vector<8x256xi32> to vector<8x256xf32>
    %cst_55 = arith.constant 0.899999976 : f32
    %139 = vector.broadcast %cst_55 : f32 to vector<8x256xf32>
    %140 = arith.mulf %139, %124 : vector<8x256xf32>
    %141 = arith.addf %140, %134 : vector<8x256xf32>
    %cst_56 = arith.constant 1.000000e+00 : f32
    %142 = vector.broadcast %cst_56 : f32 to vector<8x256xf32>
    %143 = arith.mulf %138, %142 : vector<8x256xf32>
    %144 = arith.subf %141, %143 : vector<8x256xf32>
    %cst_57 = arith.constant 1.000000e+00 : f32
    %145 = vector.broadcast %cst_57 : f32 to vector<8x256xf32>
    %146 = arith.cmpf ogt, %144, %145 : vector<8x256xf32>
    %147 = arith.extui %146 : vector<8x256xi1> to vector<8x256xi32>
    %148 = arith.sitofp %147 : vector<8x256xi32> to vector<8x256xf32>
    %149 = arith.index_cast %132 : i32 to index
    %c0_58 = arith.constant 0 : index
    %150 = vector.load %arg11[%149, %c0_58] : memref<128x256xf32, #tpu.memory_space<vmem>>, vector<8x256xf32>
    tpu.vector_store %arg11[%149, %c0_58], %148 {strides = array<i32>} : memref<128x256xf32, #tpu.memory_space<vmem>>, vector<8x256xf32>,
    %c7_i32 = arith.constant 7 : i32
    %c8_i32_59 = arith.constant 8 : i32
    %151 = arith.muli %c7_i32, %c8_i32_59 : i32
    %152 = tpu.assume_multiple %151, 8 : i32
    %153 = arith.index_cast %152 : i32 to index
    %c0_60 = arith.constant 0 : index
    %154 = vector.load %arg11[%153, %c0_60] : memref<128x256xf32, #tpu.memory_space<vmem>>, vector<8x256xf32>
    %cst_61 = arith.constant 1.000000e+00 : f32
    %155 = vector.broadcast %cst_61 : f32 to vector<8x256xf32>
    %156 = arith.cmpf ogt, %144, %155 : vector<8x256xf32>
    %157 = arith.extui %156 : vector<8x256xi1> to vector<8x256xi32>
    %158 = arith.sitofp %157 : vector<8x256xi32> to vector<8x256xf32>
    %cst_62 = arith.constant 0.899999976 : f32
    %159 = vector.broadcast %cst_62 : f32 to vector<8x256xf32>
    %160 = arith.mulf %159, %144 : vector<8x256xf32>
    %161 = arith.addf %160, %154 : vector<8x256xf32>
    %cst_63 = arith.constant 1.000000e+00 : f32
    %162 = vector.broadcast %cst_63 : f32 to vector<8x256xf32>
    %163 = arith.mulf %158, %162 : vector<8x256xf32>
    %164 = arith.subf %161, %163 : vector<8x256xf32>
    %cst_64 = arith.constant 1.000000e+00 : f32
    %165 = vector.broadcast %cst_64 : f32 to vector<8x256xf32>
    %166 = arith.cmpf ogt, %164, %165 : vector<8x256xf32>
    %167 = arith.extui %166 : vector<8x256xi1> to vector<8x256xi32>
    %168 = arith.sitofp %167 : vector<8x256xi32> to vector<8x256xf32>
    %169 = arith.index_cast %152 : i32 to index
    %c0_65 = arith.constant 0 : index
    %170 = vector.load %arg11[%169, %c0_65] : memref<128x256xf32, #tpu.memory_space<vmem>>, vector<8x256xf32>
    tpu.vector_store %arg11[%169, %c0_65], %168 {strides = array<i32>} : memref<128x256xf32, #tpu.memory_space<vmem>>, vector<8x256xf32>,
    %c8_i32_66 = arith.constant 8 : i32
    %c8_i32_67 = arith.constant 8 : i32
    %171 = arith.muli %c8_i32_66, %c8_i32_67 : i32
    %172 = tpu.assume_multiple %171, 8 : i32
    %173 = arith.index_cast %172 : i32 to index
    %c0_68 = arith.constant 0 : index
    %174 = vector.load %arg11[%173, %c0_68] : memref<128x256xf32, #tpu.memory_space<vmem>>, vector<8x256xf32>
    %cst_69 = arith.constant 1.000000e+00 : f32
    %175 = vector.broadcast %cst_69 : f32 to vector<8x256xf32>
    %176 = arith.cmpf ogt, %164, %175 : vector<8x256xf32>
    %177 = arith.extui %176 : vector<8x256xi1> to vector<8x256xi32>
    %178 = arith.sitofp %177 : vector<8x256xi32> to vector<8x256xf32>
    %cst_70 = arith.constant 0.899999976 : f32
    %179 = vector.broadcast %cst_70 : f32 to vector<8x256xf32>
    %180 = arith.mulf %179, %164 : vector<8x256xf32>
    %181 = arith.addf %180, %174 : vector<8x256xf32>
    %cst_71 = arith.constant 1.000000e+00 : f32
    %182 = vector.broadcast %cst_71 : f32 to vector<8x256xf32>
    %183 = arith.mulf %178, %182 : vector<8x256xf32>
    %184 = arith.subf %181, %183 : vector<8x256xf32>
    %cst_72 = arith.constant 1.000000e+00 : f32
    %185 = vector.broadcast %cst_72 : f32 to vector<8x256xf32>
    %186 = arith.cmpf ogt, %184, %185 : vector<8x256xf32>
    %187 = arith.extui %186 : vector<8x256xi1> to vector<8x256xi32>
    %188 = arith.sitofp %187 : vector<8x256xi32> to vector<8x256xf32>
    %189 = arith.index_cast %172 : i32 to index
    %c0_73 = arith.constant 0 : index
    %190 = vector.load %arg11[%189, %c0_73] : memref<128x256xf32, #tpu.memory_space<vmem>>, vector<8x256xf32>
    tpu.vector_store %arg11[%189, %c0_73], %188 {strides = array<i32>} : memref<128x256xf32, #tpu.memory_space<vmem>>, vector<8x256xf32>,
    %c9_i32 = arith.constant 9 : i32
    %c8_i32_74 = arith.constant 8 : i32
    %191 = arith.muli %c9_i32, %c8_i32_74 : i32
    %192 = tpu.assume_multiple %191, 8 : i32
    %193 = arith.index_cast %192 : i32 to index
    %c0_75 = arith.constant 0 : index
    %194 = vector.load %arg11[%193, %c0_75] : memref<128x256xf32, #tpu.memory_space<vmem>>, vector<8x256xf32>
    %cst_76 = arith.constant 1.000000e+00 : f32
    %195 = vector.broadcast %cst_76 : f32 to vector<8x256xf32>
    %196 = arith.cmpf ogt, %184, %195 : vector<8x256xf32>
    %197 = arith.extui %196 : vector<8x256xi1> to vector<8x256xi32>
    %198 = arith.sitofp %197 : vector<8x256xi32> to vector<8x256xf32>
    %cst_77 = arith.constant 0.899999976 : f32
    %199 = vector.broadcast %cst_77 : f32 to vector<8x256xf32>
    %200 = arith.mulf %199, %184 : vector<8x256xf32>
    %201 = arith.addf %200, %194 : vector<8x256xf32>
    %cst_78 = arith.constant 1.000000e+00 : f32
    %202 = vector.broadcast %cst_78 : f32 to vector<8x256xf32>
    %203 = arith.mulf %198, %202 : vector<8x256xf32>
    %204 = arith.subf %201, %203 : vector<8x256xf32>
    %cst_79 = arith.constant 1.000000e+00 : f32
    %205 = vector.broadcast %cst_79 : f32 to vector<8x256xf32>
    %206 = arith.cmpf ogt, %204, %205 : vector<8x256xf32>
    %207 = arith.extui %206 : vector<8x256xi1> to vector<8x256xi32>
    %208 = arith.sitofp %207 : vector<8x256xi32> to vector<8x256xf32>
    %209 = arith.index_cast %192 : i32 to index
    %c0_80 = arith.constant 0 : index
    %210 = vector.load %arg11[%209, %c0_80] : memref<128x256xf32, #tpu.memory_space<vmem>>, vector<8x256xf32>
    tpu.vector_store %arg11[%209, %c0_80], %208 {strides = array<i32>} : memref<128x256xf32, #tpu.memory_space<vmem>>, vector<8x256xf32>,
    %c10_i32 = arith.constant 10 : i32
    %c8_i32_81 = arith.constant 8 : i32
    %211 = arith.muli %c10_i32, %c8_i32_81 : i32
    %212 = tpu.assume_multiple %211, 8 : i32
    %213 = arith.index_cast %212 : i32 to index
    %c0_82 = arith.constant 0 : index
    %214 = vector.load %arg11[%213, %c0_82] : memref<128x256xf32, #tpu.memory_space<vmem>>, vector<8x256xf32>
    %cst_83 = arith.constant 1.000000e+00 : f32
    %215 = vector.broadcast %cst_83 : f32 to vector<8x256xf32>
    %216 = arith.cmpf ogt, %204, %215 : vector<8x256xf32>
    %217 = arith.extui %216 : vector<8x256xi1> to vector<8x256xi32>
    %218 = arith.sitofp %217 : vector<8x256xi32> to vector<8x256xf32>
    %cst_84 = arith.constant 0.899999976 : f32
    %219 = vector.broadcast %cst_84 : f32 to vector<8x256xf32>
    %220 = arith.mulf %219, %204 : vector<8x256xf32>
    %221 = arith.addf %220, %214 : vector<8x256xf32>
    %cst_85 = arith.constant 1.000000e+00 : f32
    %222 = vector.broadcast %cst_85 : f32 to vector<8x256xf32>
    %223 = arith.mulf %218, %222 : vector<8x256xf32>
    %224 = arith.subf %221, %223 : vector<8x256xf32>
    %cst_86 = arith.constant 1.000000e+00 : f32
    %225 = vector.broadcast %cst_86 : f32 to vector<8x256xf32>
    %226 = arith.cmpf ogt, %224, %225 : vector<8x256xf32>
    %227 = arith.extui %226 : vector<8x256xi1> to vector<8x256xi32>
    %228 = arith.sitofp %227 : vector<8x256xi32> to vector<8x256xf32>
    %229 = arith.index_cast %212 : i32 to index
    %c0_87 = arith.constant 0 : index
    %230 = vector.load %arg11[%229, %c0_87] : memref<128x256xf32, #tpu.memory_space<vmem>>, vector<8x256xf32>
    tpu.vector_store %arg11[%229, %c0_87], %228 {strides = array<i32>} : memref<128x256xf32, #tpu.memory_space<vmem>>, vector<8x256xf32>,
    %c11_i32 = arith.constant 11 : i32
    %c8_i32_88 = arith.constant 8 : i32
    %231 = arith.muli %c11_i32, %c8_i32_88 : i32
    %232 = tpu.assume_multiple %231, 8 : i32
    %233 = arith.index_cast %232 : i32 to index
    %c0_89 = arith.constant 0 : index
    %234 = vector.load %arg11[%233, %c0_89] : memref<128x256xf32, #tpu.memory_space<vmem>>, vector<8x256xf32>
    %cst_90 = arith.constant 1.000000e+00 : f32
    %235 = vector.broadcast %cst_90 : f32 to vector<8x256xf32>
    %236 = arith.cmpf ogt, %224, %235 : vector<8x256xf32>
    %237 = arith.extui %236 : vector<8x256xi1> to vector<8x256xi32>
    %238 = arith.sitofp %237 : vector<8x256xi32> to vector<8x256xf32>
    %cst_91 = arith.constant 0.899999976 : f32
    %239 = vector.broadcast %cst_91 : f32 to vector<8x256xf32>
    %240 = arith.mulf %239, %224 : vector<8x256xf32>
    %241 = arith.addf %240, %234 : vector<8x256xf32>
    %cst_92 = arith.constant 1.000000e+00 : f32
    %242 = vector.broadcast %cst_92 : f32 to vector<8x256xf32>
    %243 = arith.mulf %238, %242 : vector<8x256xf32>
    %244 = arith.subf %241, %243 : vector<8x256xf32>
    %cst_93 = arith.constant 1.000000e+00 : f32
    %245 = vector.broadcast %cst_93 : f32 to vector<8x256xf32>
    %246 = arith.cmpf ogt, %244, %245 : vector<8x256xf32>
    %247 = arith.extui %246 : vector<8x256xi1> to vector<8x256xi32>
    %248 = arith.sitofp %247 : vector<8x256xi32> to vector<8x256xf32>
    %249 = arith.index_cast %232 : i32 to index
    %c0_94 = arith.constant 0 : index
    %250 = vector.load %arg11[%249, %c0_94] : memref<128x256xf32, #tpu.memory_space<vmem>>, vector<8x256xf32>
    tpu.vector_store %arg11[%249, %c0_94], %248 {strides = array<i32>} : memref<128x256xf32, #tpu.memory_space<vmem>>, vector<8x256xf32>,
    %c12_i32 = arith.constant 12 : i32
    %c8_i32_95 = arith.constant 8 : i32
    %251 = arith.muli %c12_i32, %c8_i32_95 : i32
    %252 = tpu.assume_multiple %251, 8 : i32
    %253 = arith.index_cast %252 : i32 to index
    %c0_96 = arith.constant 0 : index
    %254 = vector.load %arg11[%253, %c0_96] : memref<128x256xf32, #tpu.memory_space<vmem>>, vector<8x256xf32>
    %cst_97 = arith.constant 1.000000e+00 : f32
    %255 = vector.broadcast %cst_97 : f32 to vector<8x256xf32>
    %256 = arith.cmpf ogt, %244, %255 : vector<8x256xf32>
    %257 = arith.extui %256 : vector<8x256xi1> to vector<8x256xi32>
    %258 = arith.sitofp %257 : vector<8x256xi32> to vector<8x256xf32>
    %cst_98 = arith.constant 0.899999976 : f32
    %259 = vector.broadcast %cst_98 : f32 to vector<8x256xf32>
    %260 = arith.mulf %259, %244 : vector<8x256xf32>
    %261 = arith.addf %260, %254 : vector<8x256xf32>
    %cst_99 = arith.constant 1.000000e+00 : f32
    %262 = vector.broadcast %cst_99 : f32 to vector<8x256xf32>
    %263 = arith.mulf %258, %262 : vector<8x256xf32>
    %264 = arith.subf %261, %263 : vector<8x256xf32>
    %cst_100 = arith.constant 1.000000e+00 : f32
    %265 = vector.broadcast %cst_100 : f32 to vector<8x256xf32>
    %266 = arith.cmpf ogt, %264, %265 : vector<8x256xf32>
    %267 = arith.extui %266 : vector<8x256xi1> to vector<8x256xi32>
    %268 = arith.sitofp %267 : vector<8x256xi32> to vector<8x256xf32>
    %269 = arith.index_cast %252 : i32 to index
    %c0_101 = arith.constant 0 : index
    %270 = vector.load %arg11[%269, %c0_101] : memref<128x256xf32, #tpu.memory_space<vmem>>, vector<8x256xf32>
    tpu.vector_store %arg11[%269, %c0_101], %268 {strides = array<i32>} : memref<128x256xf32, #tpu.memory_space<vmem>>, vector<8x256xf32>,
    %c13_i32 = arith.constant 13 : i32
    %c8_i32_102 = arith.constant 8 : i32
    %271 = arith.muli %c13_i32, %c8_i32_102 : i32
    %272 = tpu.assume_multiple %271, 8 : i32
    %273 = arith.index_cast %272 : i32 to index
    %c0_103 = arith.constant 0 : index
    %274 = vector.load %arg11[%273, %c0_103] : memref<128x256xf32, #tpu.memory_space<vmem>>, vector<8x256xf32>
    %cst_104 = arith.constant 1.000000e+00 : f32
    %275 = vector.broadcast %cst_104 : f32 to vector<8x256xf32>
    %276 = arith.cmpf ogt, %264, %275 : vector<8x256xf32>
    %277 = arith.extui %276 : vector<8x256xi1> to vector<8x256xi32>
    %278 = arith.sitofp %277 : vector<8x256xi32> to vector<8x256xf32>
    %cst_105 = arith.constant 0.899999976 : f32
    %279 = vector.broadcast %cst_105 : f32 to vector<8x256xf32>
    %280 = arith.mulf %279, %264 : vector<8x256xf32>
    %281 = arith.addf %280, %274 : vector<8x256xf32>
    %cst_106 = arith.constant 1.000000e+00 : f32
    %282 = vector.broadcast %cst_106 : f32 to vector<8x256xf32>
    %283 = arith.mulf %278, %282 : vector<8x256xf32>
    %284 = arith.subf %281, %283 : vector<8x256xf32>
    %cst_107 = arith.constant 1.000000e+00 : f32
    %285 = vector.broadcast %cst_107 : f32 to vector<8x256xf32>
    %286 = arith.cmpf ogt, %284, %285 : vector<8x256xf32>
    %287 = arith.extui %286 : vector<8x256xi1> to vector<8x256xi32>
    %288 = arith.sitofp %287 : vector<8x256xi32> to vector<8x256xf32>
    %289 = arith.index_cast %272 : i32 to index
    %c0_108 = arith.constant 0 : index
    %290 = vector.load %arg11[%289, %c0_108] : memref<128x256xf32, #tpu.memory_space<vmem>>, vector<8x256xf32>
    tpu.vector_store %arg11[%289, %c0_108], %288 {strides = array<i32>} : memref<128x256xf32, #tpu.memory_space<vmem>>, vector<8x256xf32>,
    %c14_i32 = arith.constant 14 : i32
    %c8_i32_109 = arith.constant 8 : i32
    %291 = arith.muli %c14_i32, %c8_i32_109 : i32
    %292 = tpu.assume_multiple %291, 8 : i32
    %293 = arith.index_cast %292 : i32 to index
    %c0_110 = arith.constant 0 : index
    %294 = vector.load %arg11[%293, %c0_110] : memref<128x256xf32, #tpu.memory_space<vmem>>, vector<8x256xf32>
    %cst_111 = arith.constant 1.000000e+00 : f32
    %295 = vector.broadcast %cst_111 : f32 to vector<8x256xf32>
    %296 = arith.cmpf ogt, %284, %295 : vector<8x256xf32>
    %297 = arith.extui %296 : vector<8x256xi1> to vector<8x256xi32>
    %298 = arith.sitofp %297 : vector<8x256xi32> to vector<8x256xf32>
    %cst_112 = arith.constant 0.899999976 : f32
    %299 = vector.broadcast %cst_112 : f32 to vector<8x256xf32>
    %300 = arith.mulf %299, %284 : vector<8x256xf32>
    %301 = arith.addf %300, %294 : vector<8x256xf32>
    %cst_113 = arith.constant 1.000000e+00 : f32
    %302 = vector.broadcast %cst_113 : f32 to vector<8x256xf32>
    %303 = arith.mulf %298, %302 : vector<8x256xf32>
    %304 = arith.subf %301, %303 : vector<8x256xf32>
    %cst_114 = arith.constant 1.000000e+00 : f32
    %305 = vector.broadcast %cst_114 : f32 to vector<8x256xf32>
    %306 = arith.cmpf ogt, %304, %305 : vector<8x256xf32>
    %307 = arith.extui %306 : vector<8x256xi1> to vector<8x256xi32>
    %308 = arith.sitofp %307 : vector<8x256xi32> to vector<8x256xf32>
    %309 = arith.index_cast %292 : i32 to index
    %c0_115 = arith.constant 0 : index
    %310 = vector.load %arg11[%309, %c0_115] : memref<128x256xf32, #tpu.memory_space<vmem>>, vector<8x256xf32>
    tpu.vector_store %arg11[%309, %c0_115], %308 {strides = array<i32>} : memref<128x256xf32, #tpu.memory_space<vmem>>, vector<8x256xf32>,
    %c15_i32 = arith.constant 15 : i32
    %c8_i32_116 = arith.constant 8 : i32
    %311 = arith.muli %c15_i32, %c8_i32_116 : i32
    %312 = tpu.assume_multiple %311, 8 : i32
    %313 = arith.index_cast %312 : i32 to index
    %c0_117 = arith.constant 0 : index
    %314 = vector.load %arg11[%313, %c0_117] : memref<128x256xf32, #tpu.memory_space<vmem>>, vector<8x256xf32>
    %cst_118 = arith.constant 1.000000e+00 : f32
    %315 = vector.broadcast %cst_118 : f32 to vector<8x256xf32>
    %316 = arith.cmpf ogt, %304, %315 : vector<8x256xf32>
    %317 = arith.extui %316 : vector<8x256xi1> to vector<8x256xi32>
    %318 = arith.sitofp %317 : vector<8x256xi32> to vector<8x256xf32>
    %cst_119 = arith.constant 0.899999976 : f32
    %319 = vector.broadcast %cst_119 : f32 to vector<8x256xf32>
    %320 = arith.mulf %319, %304 : vector<8x256xf32>
    %321 = arith.addf %320, %314 : vector<8x256xf32>
    %cst_120 = arith.constant 1.000000e+00 : f32
    %322 = vector.broadcast %cst_120 : f32 to vector<8x256xf32>
    %323 = arith.mulf %318, %322 : vector<8x256xf32>
    %324 = arith.subf %321, %323 : vector<8x256xf32>
    %cst_121 = arith.constant 1.000000e+00 : f32
    %325 = vector.broadcast %cst_121 : f32 to vector<8x256xf32>
    %326 = arith.cmpf ogt, %324, %325 : vector<8x256xf32>
    %327 = arith.extui %326 : vector<8x256xi1> to vector<8x256xi32>
    %328 = arith.sitofp %327 : vector<8x256xi32> to vector<8x256xf32>
    %329 = arith.index_cast %312 : i32 to index
    %c0_122 = arith.constant 0 : index
    %330 = vector.load %arg11[%329, %c0_122] : memref<128x256xf32, #tpu.memory_space<vmem>>, vector<8x256xf32>
    tpu.vector_store %arg11[%329, %c0_122], %328 {strides = array<i32>} : memref<128x256xf32, #tpu.memory_space<vmem>>, vector<8x256xf32>,
    %c16_i32 = arith.constant 16 : i32
    %c0_123 = arith.constant 0 : index
    %c0_124 = arith.constant 0 : index
    %331 = vector.load %arg9[%c0_123, %c0_124] : memref<8x256xf32, #tpu.memory_space<vmem>>, vector<8x256xf32>
    tpu.vector_store %arg9[%c0_123, %c0_124], %324 {strides = array<i32>} : memref<8x256xf32, #tpu.memory_space<vmem>>, vector<8x256xf32>,
    %c0_125 = arith.constant 0 : index
    %c0_126 = arith.constant 0 : index
    %332 = vector.load %arg11[%c0_125, %c0_126] : memref<128x256xf32, #tpu.memory_space<vmem>>, vector<128x256xf32>
    %c0_127 = arith.constant 0 : index
    %c0_128 = arith.constant 0 : index
    %333 = vector.load %arg5[%c0_127, %c0_128] : memref<256x128xf32, #tpu.memory_space<vmem>>, vector<256x128xf32>
    %cst_129 = arith.constant dense<0.000000e+00> : vector<128x128xf32>
    %334 = tpu.matmul %332, %333, %cst_129 {dimension_numbers = #tpu.dot_dimension_numbers<[1], [0], [0], [1], [0, 0, 1, 1], [], []>} : vector<128x256xf32>, vector<256x128xf32>, vector<128x128xf32> -> vector<128x128xf32>
    %c0_130 = arith.constant 0 : index
    %c0_131 = arith.constant 0 : index
    %335 = vector.load %arg6[%c0_130, %c0_131] : memref<1x128xf32, #tpu.memory_space<vmem>>, vector<1x128xf32>
    %336 = vector.broadcast %335 : vector<1x128xf32> to vector<128x128xf32>
    %337 = arith.addf %334, %336 : vector<128x128xf32>
    %c0_132 = arith.constant 0 : index
    %c0_133 = arith.constant 0 : index
    %338 = vector.load %arg8[%c0_132, %c0_133] : memref<128x128xf32, #tpu.memory_space<vmem>>, vector<128x128xf32>
    tpu.vector_store %arg8[%c0_132, %c0_133], %337 {strides = array<i32>} : memref<128x128xf32, #tpu.memory_space<vmem>>, vector<128x128xf32>,
    %c0_134 = arith.constant 0 : index
    %c0_135 = arith.constant 0 : index
    %339 = vector.load %arg10[%c0_134, %c0_135] : memref<8x128xf32, #tpu.memory_space<vmem>>, vector<8x128xf32>
    %c0_i32_136 = arith.constant 0 : i32
    %c8_i32_137 = arith.constant 8 : i32
    %340 = arith.muli %c0_i32_136, %c8_i32_137 : i32
    %341 = tpu.assume_multiple %340, 8 : i32
    %342 = arith.index_cast %341 : i32 to index
    %c0_138 = arith.constant 0 : index
    %343 = vector.load %arg8[%342, %c0_138] : memref<128x128xf32, #tpu.memory_space<vmem>>, vector<8x128xf32>
    %cst_139 = arith.constant 1.000000e+00 : f32
    %344 = vector.broadcast %cst_139 : f32 to vector<8x128xf32>
    %345 = arith.cmpf ogt, %339, %344 : vector<8x128xf32>
    %346 = arith.extui %345 : vector<8x128xi1> to vector<8x128xi32>
    %347 = arith.sitofp %346 : vector<8x128xi32> to vector<8x128xf32>
    %cst_140 = arith.constant 0.899999976 : f32
    %348 = vector.broadcast %cst_140 : f32 to vector<8x128xf32>
    %349 = arith.mulf %348, %339 : vector<8x128xf32>
    %350 = arith.addf %349, %343 : vector<8x128xf32>
    %cst_141 = arith.constant 1.000000e+00 : f32
    %351 = vector.broadcast %cst_141 : f32 to vector<8x128xf32>
    %352 = arith.mulf %347, %351 : vector<8x128xf32>
    %353 = arith.subf %350, %352 : vector<8x128xf32>
    %cst_142 = arith.constant 1.000000e+00 : f32
    %354 = vector.broadcast %cst_142 : f32 to vector<8x128xf32>
    %355 = arith.cmpf ogt, %353, %354 : vector<8x128xf32>
    %356 = arith.extui %355 : vector<8x128xi1> to vector<8x128xi32>
    %357 = arith.sitofp %356 : vector<8x128xi32> to vector<8x128xf32>
    %358 = arith.index_cast %341 : i32 to index
    %c0_143 = arith.constant 0 : index
    %359 = vector.load %arg8[%358, %c0_143] : memref<128x128xf32, #tpu.memory_space<vmem>>, vector<8x128xf32>
    tpu.vector_store %arg8[%358, %c0_143], %353 {strides = array<i32>} : memref<128x128xf32, #tpu.memory_space<vmem>>, vector<8x128xf32>,
    %360 = arith.truncf %357 : vector<8x128xf32> to vector<8x128xbf16>
    %361 = arith.index_cast %341 : i32 to index
    %c0_144 = arith.constant 0 : index
    %362 = vector.load %arg7[%361, %c0_144] : memref<128x128xbf16, #tpu.memory_space<vmem>>, vector<8x128xbf16>
    tpu.vector_store %arg7[%361, %c0_144], %360 {strides = array<i32>} : memref<128x128xbf16, #tpu.memory_space<vmem>>, vector<8x128xbf16>,
    %c1_i32_145 = arith.constant 1 : i32
    %c8_i32_146 = arith.constant 8 : i32
    %363 = arith.muli %c1_i32_145, %c8_i32_146 : i32
    %364 = tpu.assume_multiple %363, 8 : i32
    %365 = arith.index_cast %364 : i32 to index
    %c0_147 = arith.constant 0 : index
    %366 = vector.load %arg8[%365, %c0_147] : memref<128x128xf32, #tpu.memory_space<vmem>>, vector<8x128xf32>
    %cst_148 = arith.constant 1.000000e+00 : f32
    %367 = vector.broadcast %cst_148 : f32 to vector<8x128xf32>
    %368 = arith.cmpf ogt, %353, %367 : vector<8x128xf32>
    %369 = arith.extui %368 : vector<8x128xi1> to vector<8x128xi32>
    %370 = arith.sitofp %369 : vector<8x128xi32> to vector<8x128xf32>
    %cst_149 = arith.constant 0.899999976 : f32
    %371 = vector.broadcast %cst_149 : f32 to vector<8x128xf32>
    %372 = arith.mulf %371, %353 : vector<8x128xf32>
    %373 = arith.addf %372, %366 : vector<8x128xf32>
    %cst_150 = arith.constant 1.000000e+00 : f32
    %374 = vector.broadcast %cst_150 : f32 to vector<8x128xf32>
    %375 = arith.mulf %370, %374 : vector<8x128xf32>
    %376 = arith.subf %373, %375 : vector<8x128xf32>
    %cst_151 = arith.constant 1.000000e+00 : f32
    %377 = vector.broadcast %cst_151 : f32 to vector<8x128xf32>
    %378 = arith.cmpf ogt, %376, %377 : vector<8x128xf32>
    %379 = arith.extui %378 : vector<8x128xi1> to vector<8x128xi32>
    %380 = arith.sitofp %379 : vector<8x128xi32> to vector<8x128xf32>
    %381 = arith.index_cast %364 : i32 to index
    %c0_152 = arith.constant 0 : index
    %382 = vector.load %arg8[%381, %c0_152] : memref<128x128xf32, #tpu.memory_space<vmem>>, vector<8x128xf32>
    tpu.vector_store %arg8[%381, %c0_152], %376 {strides = array<i32>} : memref<128x128xf32, #tpu.memory_space<vmem>>, vector<8x128xf32>,
    %383 = arith.truncf %380 : vector<8x128xf32> to vector<8x128xbf16>
    %384 = arith.index_cast %364 : i32 to index
    %c0_153 = arith.constant 0 : index
    %385 = vector.load %arg7[%384, %c0_153] : memref<128x128xbf16, #tpu.memory_space<vmem>>, vector<8x128xbf16>
    tpu.vector_store %arg7[%384, %c0_153], %383 {strides = array<i32>} : memref<128x128xbf16, #tpu.memory_space<vmem>>, vector<8x128xbf16>,
    %c2_i32_154 = arith.constant 2 : i32
    %c8_i32_155 = arith.constant 8 : i32
    %386 = arith.muli %c2_i32_154, %c8_i32_155 : i32
    %387 = tpu.assume_multiple %386, 8 : i32
    %388 = arith.index_cast %387 : i32 to index
    %c0_156 = arith.constant 0 : index
    %389 = vector.load %arg8[%388, %c0_156] : memref<128x128xf32, #tpu.memory_space<vmem>>, vector<8x128xf32>
    %cst_157 = arith.constant 1.000000e+00 : f32
    %390 = vector.broadcast %cst_157 : f32 to vector<8x128xf32>
    %391 = arith.cmpf ogt, %376, %390 : vector<8x128xf32>
    %392 = arith.extui %391 : vector<8x128xi1> to vector<8x128xi32>
    %393 = arith.sitofp %392 : vector<8x128xi32> to vector<8x128xf32>
    %cst_158 = arith.constant 0.899999976 : f32
    %394 = vector.broadcast %cst_158 : f32 to vector<8x128xf32>
    %395 = arith.mulf %394, %376 : vector<8x128xf32>
    %396 = arith.addf %395, %389 : vector<8x128xf32>
    %cst_159 = arith.constant 1.000000e+00 : f32
    %397 = vector.broadcast %cst_159 : f32 to vector<8x128xf32>
    %398 = arith.mulf %393, %397 : vector<8x128xf32>
    %399 = arith.subf %396, %398 : vector<8x128xf32>
    %cst_160 = arith.constant 1.000000e+00 : f32
    %400 = vector.broadcast %cst_160 : f32 to vector<8x128xf32>
    %401 = arith.cmpf ogt, %399, %400 : vector<8x128xf32>
    %402 = arith.extui %401 : vector<8x128xi1> to vector<8x128xi32>
    %403 = arith.sitofp %402 : vector<8x128xi32> to vector<8x128xf32>
    %404 = arith.index_cast %387 : i32 to index
    %c0_161 = arith.constant 0 : index
    %405 = vector.load %arg8[%404, %c0_161] : memref<128x128xf32, #tpu.memory_space<vmem>>, vector<8x128xf32>
    tpu.vector_store %arg8[%404, %c0_161], %399 {strides = array<i32>} : memref<128x128xf32, #tpu.memory_space<vmem>>, vector<8x128xf32>,
    %406 = arith.truncf %403 : vector<8x128xf32> to vector<8x128xbf16>
    %407 = arith.index_cast %387 : i32 to index
    %c0_162 = arith.constant 0 : index
    %408 = vector.load %arg7[%407, %c0_162] : memref<128x128xbf16, #tpu.memory_space<vmem>>, vector<8x128xbf16>
    tpu.vector_store %arg7[%407, %c0_162], %406 {strides = array<i32>} : memref<128x128xbf16, #tpu.memory_space<vmem>>, vector<8x128xbf16>,
    %c3_i32_163 = arith.constant 3 : i32
    %c8_i32_164 = arith.constant 8 : i32
    %409 = arith.muli %c3_i32_163, %c8_i32_164 : i32
    %410 = tpu.assume_multiple %409, 8 : i32
    %411 = arith.index_cast %410 : i32 to index
    %c0_165 = arith.constant 0 : index
    %412 = vector.load %arg8[%411, %c0_165] : memref<128x128xf32, #tpu.memory_space<vmem>>, vector<8x128xf32>
    %cst_166 = arith.constant 1.000000e+00 : f32
    %413 = vector.broadcast %cst_166 : f32 to vector<8x128xf32>
    %414 = arith.cmpf ogt, %399, %413 : vector<8x128xf32>
    %415 = arith.extui %414 : vector<8x128xi1> to vector<8x128xi32>
    %416 = arith.sitofp %415 : vector<8x128xi32> to vector<8x128xf32>
    %cst_167 = arith.constant 0.899999976 : f32
    %417 = vector.broadcast %cst_167 : f32 to vector<8x128xf32>
    %418 = arith.mulf %417, %399 : vector<8x128xf32>
    %419 = arith.addf %418, %412 : vector<8x128xf32>
    %cst_168 = arith.constant 1.000000e+00 : f32
    %420 = vector.broadcast %cst_168 : f32 to vector<8x128xf32>
    %421 = arith.mulf %416, %420 : vector<8x128xf32>
    %422 = arith.subf %419, %421 : vector<8x128xf32>
    %cst_169 = arith.constant 1.000000e+00 : f32
    %423 = vector.broadcast %cst_169 : f32 to vector<8x128xf32>
    %424 = arith.cmpf ogt, %422, %423 : vector<8x128xf32>
    %425 = arith.extui %424 : vector<8x128xi1> to vector<8x128xi32>
    %426 = arith.sitofp %425 : vector<8x128xi32> to vector<8x128xf32>
    %427 = arith.index_cast %410 : i32 to index
    %c0_170 = arith.constant 0 : index
    %428 = vector.load %arg8[%427, %c0_170] : memref<128x128xf32, #tpu.memory_space<vmem>>, vector<8x128xf32>
    tpu.vector_store %arg8[%427, %c0_170], %422 {strides = array<i32>} : memref<128x128xf32, #tpu.memory_space<vmem>>, vector<8x128xf32>,
    %429 = arith.truncf %426 : vector<8x128xf32> to vector<8x128xbf16>
    %430 = arith.index_cast %410 : i32 to index
    %c0_171 = arith.constant 0 : index
    %431 = vector.load %arg7[%430, %c0_171] : memref<128x128xbf16, #tpu.memory_space<vmem>>, vector<8x128xbf16>
    tpu.vector_store %arg7[%430, %c0_171], %429 {strides = array<i32>} : memref<128x128xbf16, #tpu.memory_space<vmem>>, vector<8x128xbf16>,
    %c4_i32_172 = arith.constant 4 : i32
    %c8_i32_173 = arith.constant 8 : i32
    %432 = arith.muli %c4_i32_172, %c8_i32_173 : i32
    %433 = tpu.assume_multiple %432, 8 : i32
    %434 = arith.index_cast %433 : i32 to index
    %c0_174 = arith.constant 0 : index
    %435 = vector.load %arg8[%434, %c0_174] : memref<128x128xf32, #tpu.memory_space<vmem>>, vector<8x128xf32>
    %cst_175 = arith.constant 1.000000e+00 : f32
    %436 = vector.broadcast %cst_175 : f32 to vector<8x128xf32>
    %437 = arith.cmpf ogt, %422, %436 : vector<8x128xf32>
    %438 = arith.extui %437 : vector<8x128xi1> to vector<8x128xi32>
    %439 = arith.sitofp %438 : vector<8x128xi32> to vector<8x128xf32>
    %cst_176 = arith.constant 0.899999976 : f32
    %440 = vector.broadcast %cst_176 : f32 to vector<8x128xf32>
    %441 = arith.mulf %440, %422 : vector<8x128xf32>
    %442 = arith.addf %441, %435 : vector<8x128xf32>
    %cst_177 = arith.constant 1.000000e+00 : f32
    %443 = vector.broadcast %cst_177 : f32 to vector<8x128xf32>
    %444 = arith.mulf %439, %443 : vector<8x128xf32>
    %445 = arith.subf %442, %444 : vector<8x128xf32>
    %cst_178 = arith.constant 1.000000e+00 : f32
    %446 = vector.broadcast %cst_178 : f32 to vector<8x128xf32>
    %447 = arith.cmpf ogt, %445, %446 : vector<8x128xf32>
    %448 = arith.extui %447 : vector<8x128xi1> to vector<8x128xi32>
    %449 = arith.sitofp %448 : vector<8x128xi32> to vector<8x128xf32>
    %450 = arith.index_cast %433 : i32 to index
    %c0_179 = arith.constant 0 : index
    %451 = vector.load %arg8[%450, %c0_179] : memref<128x128xf32, #tpu.memory_space<vmem>>, vector<8x128xf32>
    tpu.vector_store %arg8[%450, %c0_179], %445 {strides = array<i32>} : memref<128x128xf32, #tpu.memory_space<vmem>>, vector<8x128xf32>,
    %452 = arith.truncf %449 : vector<8x128xf32> to vector<8x128xbf16>
    %453 = arith.index_cast %433 : i32 to index
    %c0_180 = arith.constant 0 : index
    %454 = vector.load %arg7[%453, %c0_180] : memref<128x128xbf16, #tpu.memory_space<vmem>>, vector<8x128xbf16>
    tpu.vector_store %arg7[%453, %c0_180], %452 {strides = array<i32>} : memref<128x128xbf16, #tpu.memory_space<vmem>>, vector<8x128xbf16>,
    %c5_i32_181 = arith.constant 5 : i32
    %c8_i32_182 = arith.constant 8 : i32
    %455 = arith.muli %c5_i32_181, %c8_i32_182 : i32
    %456 = tpu.assume_multiple %455, 8 : i32
    %457 = arith.index_cast %456 : i32 to index
    %c0_183 = arith.constant 0 : index
    %458 = vector.load %arg8[%457, %c0_183] : memref<128x128xf32, #tpu.memory_space<vmem>>, vector<8x128xf32>
    %cst_184 = arith.constant 1.000000e+00 : f32
    %459 = vector.broadcast %cst_184 : f32 to vector<8x128xf32>
    %460 = arith.cmpf ogt, %445, %459 : vector<8x128xf32>
    %461 = arith.extui %460 : vector<8x128xi1> to vector<8x128xi32>
    %462 = arith.sitofp %461 : vector<8x128xi32> to vector<8x128xf32>
    %cst_185 = arith.constant 0.899999976 : f32
    %463 = vector.broadcast %cst_185 : f32 to vector<8x128xf32>
    %464 = arith.mulf %463, %445 : vector<8x128xf32>
    %465 = arith.addf %464, %458 : vector<8x128xf32>
    %cst_186 = arith.constant 1.000000e+00 : f32
    %466 = vector.broadcast %cst_186 : f32 to vector<8x128xf32>
    %467 = arith.mulf %462, %466 : vector<8x128xf32>
    %468 = arith.subf %465, %467 : vector<8x128xf32>
    %cst_187 = arith.constant 1.000000e+00 : f32
    %469 = vector.broadcast %cst_187 : f32 to vector<8x128xf32>
    %470 = arith.cmpf ogt, %468, %469 : vector<8x128xf32>
    %471 = arith.extui %470 : vector<8x128xi1> to vector<8x128xi32>
    %472 = arith.sitofp %471 : vector<8x128xi32> to vector<8x128xf32>
    %473 = arith.index_cast %456 : i32 to index
    %c0_188 = arith.constant 0 : index
    %474 = vector.load %arg8[%473, %c0_188] : memref<128x128xf32, #tpu.memory_space<vmem>>, vector<8x128xf32>
    tpu.vector_store %arg8[%473, %c0_188], %468 {strides = array<i32>} : memref<128x128xf32, #tpu.memory_space<vmem>>, vector<8x128xf32>,
    %475 = arith.truncf %472 : vector<8x128xf32> to vector<8x128xbf16>
    %476 = arith.index_cast %456 : i32 to index
    %c0_189 = arith.constant 0 : index
    %477 = vector.load %arg7[%476, %c0_189] : memref<128x128xbf16, #tpu.memory_space<vmem>>, vector<8x128xbf16>
    tpu.vector_store %arg7[%476, %c0_189], %475 {strides = array<i32>} : memref<128x128xbf16, #tpu.memory_space<vmem>>, vector<8x128xbf16>,
    %c6_i32_190 = arith.constant 6 : i32
    %c8_i32_191 = arith.constant 8 : i32
    %478 = arith.muli %c6_i32_190, %c8_i32_191 : i32
    %479 = tpu.assume_multiple %478, 8 : i32
    %480 = arith.index_cast %479 : i32 to index
    %c0_192 = arith.constant 0 : index
    %481 = vector.load %arg8[%480, %c0_192] : memref<128x128xf32, #tpu.memory_space<vmem>>, vector<8x128xf32>
    %cst_193 = arith.constant 1.000000e+00 : f32
    %482 = vector.broadcast %cst_193 : f32 to vector<8x128xf32>
    %483 = arith.cmpf ogt, %468, %482 : vector<8x128xf32>
    %484 = arith.extui %483 : vector<8x128xi1> to vector<8x128xi32>
    %485 = arith.sitofp %484 : vector<8x128xi32> to vector<8x128xf32>
    %cst_194 = arith.constant 0.899999976 : f32
    %486 = vector.broadcast %cst_194 : f32 to vector<8x128xf32>
    %487 = arith.mulf %486, %468 : vector<8x128xf32>
    %488 = arith.addf %487, %481 : vector<8x128xf32>
    %cst_195 = arith.constant 1.000000e+00 : f32
    %489 = vector.broadcast %cst_195 : f32 to vector<8x128xf32>
    %490 = arith.mulf %485, %489 : vector<8x128xf32>
    %491 = arith.subf %488, %490 : vector<8x128xf32>
    %cst_196 = arith.constant 1.000000e+00 : f32
    %492 = vector.broadcast %cst_196 : f32 to vector<8x128xf32>
    %493 = arith.cmpf ogt, %491, %492 : vector<8x128xf32>
    %494 = arith.extui %493 : vector<8x128xi1> to vector<8x128xi32>
    %495 = arith.sitofp %494 : vector<8x128xi32> to vector<8x128xf32>
    %496 = arith.index_cast %479 : i32 to index
    %c0_197 = arith.constant 0 : index
    %497 = vector.load %arg8[%496, %c0_197] : memref<128x128xf32, #tpu.memory_space<vmem>>, vector<8x128xf32>
    tpu.vector_store %arg8[%496, %c0_197], %491 {strides = array<i32>} : memref<128x128xf32, #tpu.memory_space<vmem>>, vector<8x128xf32>,
    %498 = arith.truncf %495 : vector<8x128xf32> to vector<8x128xbf16>
    %499 = arith.index_cast %479 : i32 to index
    %c0_198 = arith.constant 0 : index
    %500 = vector.load %arg7[%499, %c0_198] : memref<128x128xbf16, #tpu.memory_space<vmem>>, vector<8x128xbf16>
    tpu.vector_store %arg7[%499, %c0_198], %498 {strides = array<i32>} : memref<128x128xbf16, #tpu.memory_space<vmem>>, vector<8x128xbf16>,
    %c7_i32_199 = arith.constant 7 : i32
    %c8_i32_200 = arith.constant 8 : i32
    %501 = arith.muli %c7_i32_199, %c8_i32_200 : i32
    %502 = tpu.assume_multiple %501, 8 : i32
    %503 = arith.index_cast %502 : i32 to index
    %c0_201 = arith.constant 0 : index
    %504 = vector.load %arg8[%503, %c0_201] : memref<128x128xf32, #tpu.memory_space<vmem>>, vector<8x128xf32>
    %cst_202 = arith.constant 1.000000e+00 : f32
    %505 = vector.broadcast %cst_202 : f32 to vector<8x128xf32>
    %506 = arith.cmpf ogt, %491, %505 : vector<8x128xf32>
    %507 = arith.extui %506 : vector<8x128xi1> to vector<8x128xi32>
    %508 = arith.sitofp %507 : vector<8x128xi32> to vector<8x128xf32>
    %cst_203 = arith.constant 0.899999976 : f32
    %509 = vector.broadcast %cst_203 : f32 to vector<8x128xf32>
    %510 = arith.mulf %509, %491 : vector<8x128xf32>
    %511 = arith.addf %510, %504 : vector<8x128xf32>
    %cst_204 = arith.constant 1.000000e+00 : f32
    %512 = vector.broadcast %cst_204 : f32 to vector<8x128xf32>
    %513 = arith.mulf %508, %512 : vector<8x128xf32>
    %514 = arith.subf %511, %513 : vector<8x128xf32>
    %cst_205 = arith.constant 1.000000e+00 : f32
    %515 = vector.broadcast %cst_205 : f32 to vector<8x128xf32>
    %516 = arith.cmpf ogt, %514, %515 : vector<8x128xf32>
    %517 = arith.extui %516 : vector<8x128xi1> to vector<8x128xi32>
    %518 = arith.sitofp %517 : vector<8x128xi32> to vector<8x128xf32>
    %519 = arith.index_cast %502 : i32 to index
    %c0_206 = arith.constant 0 : index
    %520 = vector.load %arg8[%519, %c0_206] : memref<128x128xf32, #tpu.memory_space<vmem>>, vector<8x128xf32>
    tpu.vector_store %arg8[%519, %c0_206], %514 {strides = array<i32>} : memref<128x128xf32, #tpu.memory_space<vmem>>, vector<8x128xf32>,
    %521 = arith.truncf %518 : vector<8x128xf32> to vector<8x128xbf16>
    %522 = arith.index_cast %502 : i32 to index
    %c0_207 = arith.constant 0 : index
    %523 = vector.load %arg7[%522, %c0_207] : memref<128x128xbf16, #tpu.memory_space<vmem>>, vector<8x128xbf16>
    tpu.vector_store %arg7[%522, %c0_207], %521 {strides = array<i32>} : memref<128x128xbf16, #tpu.memory_space<vmem>>, vector<8x128xbf16>,
    %c8_i32_208 = arith.constant 8 : i32
    %c8_i32_209 = arith.constant 8 : i32
    %524 = arith.muli %c8_i32_208, %c8_i32_209 : i32
    %525 = tpu.assume_multiple %524, 8 : i32
    %526 = arith.index_cast %525 : i32 to index
    %c0_210 = arith.constant 0 : index
    %527 = vector.load %arg8[%526, %c0_210] : memref<128x128xf32, #tpu.memory_space<vmem>>, vector<8x128xf32>
    %cst_211 = arith.constant 1.000000e+00 : f32
    %528 = vector.broadcast %cst_211 : f32 to vector<8x128xf32>
    %529 = arith.cmpf ogt, %514, %528 : vector<8x128xf32>
    %530 = arith.extui %529 : vector<8x128xi1> to vector<8x128xi32>
    %531 = arith.sitofp %530 : vector<8x128xi32> to vector<8x128xf32>
    %cst_212 = arith.constant 0.899999976 : f32
    %532 = vector.broadcast %cst_212 : f32 to vector<8x128xf32>
    %533 = arith.mulf %532, %514 : vector<8x128xf32>
    %534 = arith.addf %533, %527 : vector<8x128xf32>
    %cst_213 = arith.constant 1.000000e+00 : f32
    %535 = vector.broadcast %cst_213 : f32 to vector<8x128xf32>
    %536 = arith.mulf %531, %535 : vector<8x128xf32>
    %537 = arith.subf %534, %536 : vector<8x128xf32>
    %cst_214 = arith.constant 1.000000e+00 : f32
    %538 = vector.broadcast %cst_214 : f32 to vector<8x128xf32>
    %539 = arith.cmpf ogt, %537, %538 : vector<8x128xf32>
    %540 = arith.extui %539 : vector<8x128xi1> to vector<8x128xi32>
    %541 = arith.sitofp %540 : vector<8x128xi32> to vector<8x128xf32>
    %542 = arith.index_cast %525 : i32 to index
    %c0_215 = arith.constant 0 : index
    %543 = vector.load %arg8[%542, %c0_215] : memref<128x128xf32, #tpu.memory_space<vmem>>, vector<8x128xf32>
    tpu.vector_store %arg8[%542, %c0_215], %537 {strides = array<i32>} : memref<128x128xf32, #tpu.memory_space<vmem>>, vector<8x128xf32>,
    %544 = arith.truncf %541 : vector<8x128xf32> to vector<8x128xbf16>
    %545 = arith.index_cast %525 : i32 to index
    %c0_216 = arith.constant 0 : index
    %546 = vector.load %arg7[%545, %c0_216] : memref<128x128xbf16, #tpu.memory_space<vmem>>, vector<8x128xbf16>
    tpu.vector_store %arg7[%545, %c0_216], %544 {strides = array<i32>} : memref<128x128xbf16, #tpu.memory_space<vmem>>, vector<8x128xbf16>,
    %c9_i32_217 = arith.constant 9 : i32
    %c8_i32_218 = arith.constant 8 : i32
    %547 = arith.muli %c9_i32_217, %c8_i32_218 : i32
    %548 = tpu.assume_multiple %547, 8 : i32
    %549 = arith.index_cast %548 : i32 to index
    %c0_219 = arith.constant 0 : index
    %550 = vector.load %arg8[%549, %c0_219] : memref<128x128xf32, #tpu.memory_space<vmem>>, vector<8x128xf32>
    %cst_220 = arith.constant 1.000000e+00 : f32
    %551 = vector.broadcast %cst_220 : f32 to vector<8x128xf32>
    %552 = arith.cmpf ogt, %537, %551 : vector<8x128xf32>
    %553 = arith.extui %552 : vector<8x128xi1> to vector<8x128xi32>
    %554 = arith.sitofp %553 : vector<8x128xi32> to vector<8x128xf32>
    %cst_221 = arith.constant 0.899999976 : f32
    %555 = vector.broadcast %cst_221 : f32 to vector<8x128xf32>
    %556 = arith.mulf %555, %537 : vector<8x128xf32>
    %557 = arith.addf %556, %550 : vector<8x128xf32>
    %cst_222 = arith.constant 1.000000e+00 : f32
    %558 = vector.broadcast %cst_222 : f32 to vector<8x128xf32>
    %559 = arith.mulf %554, %558 : vector<8x128xf32>
    %560 = arith.subf %557, %559 : vector<8x128xf32>
    %cst_223 = arith.constant 1.000000e+00 : f32
    %561 = vector.broadcast %cst_223 : f32 to vector<8x128xf32>
    %562 = arith.cmpf ogt, %560, %561 : vector<8x128xf32>
    %563 = arith.extui %562 : vector<8x128xi1> to vector<8x128xi32>
    %564 = arith.sitofp %563 : vector<8x128xi32> to vector<8x128xf32>
    %565 = arith.index_cast %548 : i32 to index
    %c0_224 = arith.constant 0 : index
    %566 = vector.load %arg8[%565, %c0_224] : memref<128x128xf32, #tpu.memory_space<vmem>>, vector<8x128xf32>
    tpu.vector_store %arg8[%565, %c0_224], %560 {strides = array<i32>} : memref<128x128xf32, #tpu.memory_space<vmem>>, vector<8x128xf32>,
    %567 = arith.truncf %564 : vector<8x128xf32> to vector<8x128xbf16>
    %568 = arith.index_cast %548 : i32 to index
    %c0_225 = arith.constant 0 : index
    %569 = vector.load %arg7[%568, %c0_225] : memref<128x128xbf16, #tpu.memory_space<vmem>>, vector<8x128xbf16>
    tpu.vector_store %arg7[%568, %c0_225], %567 {strides = array<i32>} : memref<128x128xbf16, #tpu.memory_space<vmem>>, vector<8x128xbf16>,
    %c10_i32_226 = arith.constant 10 : i32
    %c8_i32_227 = arith.constant 8 : i32
    %570 = arith.muli %c10_i32_226, %c8_i32_227 : i32
    %571 = tpu.assume_multiple %570, 8 : i32
    %572 = arith.index_cast %571 : i32 to index
    %c0_228 = arith.constant 0 : index
    %573 = vector.load %arg8[%572, %c0_228] : memref<128x128xf32, #tpu.memory_space<vmem>>, vector<8x128xf32>
    %cst_229 = arith.constant 1.000000e+00 : f32
    %574 = vector.broadcast %cst_229 : f32 to vector<8x128xf32>
    %575 = arith.cmpf ogt, %560, %574 : vector<8x128xf32>
    %576 = arith.extui %575 : vector<8x128xi1> to vector<8x128xi32>
    %577 = arith.sitofp %576 : vector<8x128xi32> to vector<8x128xf32>
    %cst_230 = arith.constant 0.899999976 : f32
    %578 = vector.broadcast %cst_230 : f32 to vector<8x128xf32>
    %579 = arith.mulf %578, %560 : vector<8x128xf32>
    %580 = arith.addf %579, %573 : vector<8x128xf32>
    %cst_231 = arith.constant 1.000000e+00 : f32
    %581 = vector.broadcast %cst_231 : f32 to vector<8x128xf32>
    %582 = arith.mulf %577, %581 : vector<8x128xf32>
    %583 = arith.subf %580, %582 : vector<8x128xf32>
    %cst_232 = arith.constant 1.000000e+00 : f32
    %584 = vector.broadcast %cst_232 : f32 to vector<8x128xf32>
    %585 = arith.cmpf ogt, %583, %584 : vector<8x128xf32>
    %586 = arith.extui %585 : vector<8x128xi1> to vector<8x128xi32>
    %587 = arith.sitofp %586 : vector<8x128xi32> to vector<8x128xf32>
    %588 = arith.index_cast %571 : i32 to index
    %c0_233 = arith.constant 0 : index
    %589 = vector.load %arg8[%588, %c0_233] : memref<128x128xf32, #tpu.memory_space<vmem>>, vector<8x128xf32>
    tpu.vector_store %arg8[%588, %c0_233], %583 {strides = array<i32>} : memref<128x128xf32, #tpu.memory_space<vmem>>, vector<8x128xf32>,
    %590 = arith.truncf %587 : vector<8x128xf32> to vector<8x128xbf16>
    %591 = arith.index_cast %571 : i32 to index
    %c0_234 = arith.constant 0 : index
    %592 = vector.load %arg7[%591, %c0_234] : memref<128x128xbf16, #tpu.memory_space<vmem>>, vector<8x128xbf16>
    tpu.vector_store %arg7[%591, %c0_234], %590 {strides = array<i32>} : memref<128x128xbf16, #tpu.memory_space<vmem>>, vector<8x128xbf16>,
    %c11_i32_235 = arith.constant 11 : i32
    %c8_i32_236 = arith.constant 8 : i32
    %593 = arith.muli %c11_i32_235, %c8_i32_236 : i32
    %594 = tpu.assume_multiple %593, 8 : i32
    %595 = arith.index_cast %594 : i32 to index
    %c0_237 = arith.constant 0 : index
    %596 = vector.load %arg8[%595, %c0_237] : memref<128x128xf32, #tpu.memory_space<vmem>>, vector<8x128xf32>
    %cst_238 = arith.constant 1.000000e+00 : f32
    %597 = vector.broadcast %cst_238 : f32 to vector<8x128xf32>
    %598 = arith.cmpf ogt, %583, %597 : vector<8x128xf32>
    %599 = arith.extui %598 : vector<8x128xi1> to vector<8x128xi32>
    %600 = arith.sitofp %599 : vector<8x128xi32> to vector<8x128xf32>
    %cst_239 = arith.constant 0.899999976 : f32
    %601 = vector.broadcast %cst_239 : f32 to vector<8x128xf32>
    %602 = arith.mulf %601, %583 : vector<8x128xf32>
    %603 = arith.addf %602, %596 : vector<8x128xf32>
    %cst_240 = arith.constant 1.000000e+00 : f32
    %604 = vector.broadcast %cst_240 : f32 to vector<8x128xf32>
    %605 = arith.mulf %600, %604 : vector<8x128xf32>
    %606 = arith.subf %603, %605 : vector<8x128xf32>
    %cst_241 = arith.constant 1.000000e+00 : f32
    %607 = vector.broadcast %cst_241 : f32 to vector<8x128xf32>
    %608 = arith.cmpf ogt, %606, %607 : vector<8x128xf32>
    %609 = arith.extui %608 : vector<8x128xi1> to vector<8x128xi32>
    %610 = arith.sitofp %609 : vector<8x128xi32> to vector<8x128xf32>
    %611 = arith.index_cast %594 : i32 to index
    %c0_242 = arith.constant 0 : index
    %612 = vector.load %arg8[%611, %c0_242] : memref<128x128xf32, #tpu.memory_space<vmem>>, vector<8x128xf32>
    tpu.vector_store %arg8[%611, %c0_242], %606 {strides = array<i32>} : memref<128x128xf32, #tpu.memory_space<vmem>>, vector<8x128xf32>,
    %613 = arith.truncf %610 : vector<8x128xf32> to vector<8x128xbf16>
    %614 = arith.index_cast %594 : i32 to index
    %c0_243 = arith.constant 0 : index
    %615 = vector.load %arg7[%614, %c0_243] : memref<128x128xbf16, #tpu.memory_space<vmem>>, vector<8x128xbf16>
    tpu.vector_store %arg7[%614, %c0_243], %613 {strides = array<i32>} : memref<128x128xbf16, #tpu.memory_space<vmem>>, vector<8x128xbf16>,
    %c12_i32_244 = arith.constant 12 : i32
    %c8_i32_245 = arith.constant 8 : i32
    %616 = arith.muli %c12_i32_244, %c8_i32_245 : i32
    %617 = tpu.assume_multiple %616, 8 : i32
    %618 = arith.index_cast %617 : i32 to index
    %c0_246 = arith.constant 0 : index
    %619 = vector.load %arg8[%618, %c0_246] : memref<128x128xf32, #tpu.memory_space<vmem>>, vector<8x128xf32>
    %cst_247 = arith.constant 1.000000e+00 : f32
    %620 = vector.broadcast %cst_247 : f32 to vector<8x128xf32>
    %621 = arith.cmpf ogt, %606, %620 : vector<8x128xf32>
    %622 = arith.extui %621 : vector<8x128xi1> to vector<8x128xi32>
    %623 = arith.sitofp %622 : vector<8x128xi32> to vector<8x128xf32>
    %cst_248 = arith.constant 0.899999976 : f32
    %624 = vector.broadcast %cst_248 : f32 to vector<8x128xf32>
    %625 = arith.mulf %624, %606 : vector<8x128xf32>
    %626 = arith.addf %625, %619 : vector<8x128xf32>
    %cst_249 = arith.constant 1.000000e+00 : f32
    %627 = vector.broadcast %cst_249 : f32 to vector<8x128xf32>
    %628 = arith.mulf %623, %627 : vector<8x128xf32>
    %629 = arith.subf %626, %628 : vector<8x128xf32>
    %cst_250 = arith.constant 1.000000e+00 : f32
    %630 = vector.broadcast %cst_250 : f32 to vector<8x128xf32>
    %631 = arith.cmpf ogt, %629, %630 : vector<8x128xf32>
    %632 = arith.extui %631 : vector<8x128xi1> to vector<8x128xi32>
    %633 = arith.sitofp %632 : vector<8x128xi32> to vector<8x128xf32>
    %634 = arith.index_cast %617 : i32 to index
    %c0_251 = arith.constant 0 : index
    %635 = vector.load %arg8[%634, %c0_251] : memref<128x128xf32, #tpu.memory_space<vmem>>, vector<8x128xf32>
    tpu.vector_store %arg8[%634, %c0_251], %629 {strides = array<i32>} : memref<128x128xf32, #tpu.memory_space<vmem>>, vector<8x128xf32>,
    %636 = arith.truncf %633 : vector<8x128xf32> to vector<8x128xbf16>
    %637 = arith.index_cast %617 : i32 to index
    %c0_252 = arith.constant 0 : index
    %638 = vector.load %arg7[%637, %c0_252] : memref<128x128xbf16, #tpu.memory_space<vmem>>, vector<8x128xbf16>
    tpu.vector_store %arg7[%637, %c0_252], %636 {strides = array<i32>} : memref<128x128xbf16, #tpu.memory_space<vmem>>, vector<8x128xbf16>,
    %c13_i32_253 = arith.constant 13 : i32
    %c8_i32_254 = arith.constant 8 : i32
    %639 = arith.muli %c13_i32_253, %c8_i32_254 : i32
    %640 = tpu.assume_multiple %639, 8 : i32
    %641 = arith.index_cast %640 : i32 to index
    %c0_255 = arith.constant 0 : index
    %642 = vector.load %arg8[%641, %c0_255] : memref<128x128xf32, #tpu.memory_space<vmem>>, vector<8x128xf32>
    %cst_256 = arith.constant 1.000000e+00 : f32
    %643 = vector.broadcast %cst_256 : f32 to vector<8x128xf32>
    %644 = arith.cmpf ogt, %629, %643 : vector<8x128xf32>
    %645 = arith.extui %644 : vector<8x128xi1> to vector<8x128xi32>
    %646 = arith.sitofp %645 : vector<8x128xi32> to vector<8x128xf32>
    %cst_257 = arith.constant 0.899999976 : f32
    %647 = vector.broadcast %cst_257 : f32 to vector<8x128xf32>
    %648 = arith.mulf %647, %629 : vector<8x128xf32>
    %649 = arith.addf %648, %642 : vector<8x128xf32>
    %cst_258 = arith.constant 1.000000e+00 : f32
    %650 = vector.broadcast %cst_258 : f32 to vector<8x128xf32>
    %651 = arith.mulf %646, %650 : vector<8x128xf32>
    %652 = arith.subf %649, %651 : vector<8x128xf32>
    %cst_259 = arith.constant 1.000000e+00 : f32
    %653 = vector.broadcast %cst_259 : f32 to vector<8x128xf32>
    %654 = arith.cmpf ogt, %652, %653 : vector<8x128xf32>
    %655 = arith.extui %654 : vector<8x128xi1> to vector<8x128xi32>
    %656 = arith.sitofp %655 : vector<8x128xi32> to vector<8x128xf32>
    %657 = arith.index_cast %640 : i32 to index
    %c0_260 = arith.constant 0 : index
    %658 = vector.load %arg8[%657, %c0_260] : memref<128x128xf32, #tpu.memory_space<vmem>>, vector<8x128xf32>
    tpu.vector_store %arg8[%657, %c0_260], %652 {strides = array<i32>} : memref<128x128xf32, #tpu.memory_space<vmem>>, vector<8x128xf32>,
    %659 = arith.truncf %656 : vector<8x128xf32> to vector<8x128xbf16>
    %660 = arith.index_cast %640 : i32 to index
    %c0_261 = arith.constant 0 : index
    %661 = vector.load %arg7[%660, %c0_261] : memref<128x128xbf16, #tpu.memory_space<vmem>>, vector<8x128xbf16>
    tpu.vector_store %arg7[%660, %c0_261], %659 {strides = array<i32>} : memref<128x128xbf16, #tpu.memory_space<vmem>>, vector<8x128xbf16>,
    %c14_i32_262 = arith.constant 14 : i32
    %c8_i32_263 = arith.constant 8 : i32
    %662 = arith.muli %c14_i32_262, %c8_i32_263 : i32
    %663 = tpu.assume_multiple %662, 8 : i32
    %664 = arith.index_cast %663 : i32 to index
    %c0_264 = arith.constant 0 : index
    %665 = vector.load %arg8[%664, %c0_264] : memref<128x128xf32, #tpu.memory_space<vmem>>, vector<8x128xf32>
    %cst_265 = arith.constant 1.000000e+00 : f32
    %666 = vector.broadcast %cst_265 : f32 to vector<8x128xf32>
    %667 = arith.cmpf ogt, %652, %666 : vector<8x128xf32>
    %668 = arith.extui %667 : vector<8x128xi1> to vector<8x128xi32>
    %669 = arith.sitofp %668 : vector<8x128xi32> to vector<8x128xf32>
    %cst_266 = arith.constant 0.899999976 : f32
    %670 = vector.broadcast %cst_266 : f32 to vector<8x128xf32>
    %671 = arith.mulf %670, %652 : vector<8x128xf32>
    %672 = arith.addf %671, %665 : vector<8x128xf32>
    %cst_267 = arith.constant 1.000000e+00 : f32
    %673 = vector.broadcast %cst_267 : f32 to vector<8x128xf32>
    %674 = arith.mulf %669, %673 : vector<8x128xf32>
    %675 = arith.subf %672, %674 : vector<8x128xf32>
    %cst_268 = arith.constant 1.000000e+00 : f32
    %676 = vector.broadcast %cst_268 : f32 to vector<8x128xf32>
    %677 = arith.cmpf ogt, %675, %676 : vector<8x128xf32>
    %678 = arith.extui %677 : vector<8x128xi1> to vector<8x128xi32>
    %679 = arith.sitofp %678 : vector<8x128xi32> to vector<8x128xf32>
    %680 = arith.index_cast %663 : i32 to index
    %c0_269 = arith.constant 0 : index
    %681 = vector.load %arg8[%680, %c0_269] : memref<128x128xf32, #tpu.memory_space<vmem>>, vector<8x128xf32>
    tpu.vector_store %arg8[%680, %c0_269], %675 {strides = array<i32>} : memref<128x128xf32, #tpu.memory_space<vmem>>, vector<8x128xf32>,
    %682 = arith.truncf %679 : vector<8x128xf32> to vector<8x128xbf16>
    %683 = arith.index_cast %663 : i32 to index
    %c0_270 = arith.constant 0 : index
    %684 = vector.load %arg7[%683, %c0_270] : memref<128x128xbf16, #tpu.memory_space<vmem>>, vector<8x128xbf16>
    tpu.vector_store %arg7[%683, %c0_270], %682 {strides = array<i32>} : memref<128x128xbf16, #tpu.memory_space<vmem>>, vector<8x128xbf16>,
    %c15_i32_271 = arith.constant 15 : i32
    %c8_i32_272 = arith.constant 8 : i32
    %685 = arith.muli %c15_i32_271, %c8_i32_272 : i32
    %686 = tpu.assume_multiple %685, 8 : i32
    %687 = arith.index_cast %686 : i32 to index
    %c0_273 = arith.constant 0 : index
    %688 = vector.load %arg8[%687, %c0_273] : memref<128x128xf32, #tpu.memory_space<vmem>>, vector<8x128xf32>
    %cst_274 = arith.constant 1.000000e+00 : f32
    %689 = vector.broadcast %cst_274 : f32 to vector<8x128xf32>
    %690 = arith.cmpf ogt, %675, %689 : vector<8x128xf32>
    %691 = arith.extui %690 : vector<8x128xi1> to vector<8x128xi32>
    %692 = arith.sitofp %691 : vector<8x128xi32> to vector<8x128xf32>
    %cst_275 = arith.constant 0.899999976 : f32
    %693 = vector.broadcast %cst_275 : f32 to vector<8x128xf32>
    %694 = arith.mulf %693, %675 : vector<8x128xf32>
    %695 = arith.addf %694, %688 : vector<8x128xf32>
    %cst_276 = arith.constant 1.000000e+00 : f32
    %696 = vector.broadcast %cst_276 : f32 to vector<8x128xf32>
    %697 = arith.mulf %692, %696 : vector<8x128xf32>
    %698 = arith.subf %695, %697 : vector<8x128xf32>
    %cst_277 = arith.constant 1.000000e+00 : f32
    %699 = vector.broadcast %cst_277 : f32 to vector<8x128xf32>
    %700 = arith.cmpf ogt, %698, %699 : vector<8x128xf32>
    %701 = arith.extui %700 : vector<8x128xi1> to vector<8x128xi32>
    %702 = arith.sitofp %701 : vector<8x128xi32> to vector<8x128xf32>
    %703 = arith.index_cast %686 : i32 to index
    %c0_278 = arith.constant 0 : index
    %704 = vector.load %arg8[%703, %c0_278] : memref<128x128xf32, #tpu.memory_space<vmem>>, vector<8x128xf32>
    tpu.vector_store %arg8[%703, %c0_278], %698 {strides = array<i32>} : memref<128x128xf32, #tpu.memory_space<vmem>>, vector<8x128xf32>,
    %705 = arith.truncf %702 : vector<8x128xf32> to vector<8x128xbf16>
    %706 = arith.index_cast %686 : i32 to index
    %c0_279 = arith.constant 0 : index
    %707 = vector.load %arg7[%706, %c0_279] : memref<128x128xbf16, #tpu.memory_space<vmem>>, vector<8x128xbf16>
    tpu.vector_store %arg7[%706, %c0_279], %705 {strides = array<i32>} : memref<128x128xbf16, #tpu.memory_space<vmem>>, vector<8x128xbf16>,
    %c16_i32_280 = arith.constant 16 : i32
    %c0_281 = arith.constant 0 : index
    %c0_282 = arith.constant 0 : index
    %708 = vector.load %arg10[%c0_281, %c0_282] : memref<8x128xf32, #tpu.memory_space<vmem>>, vector<8x128xf32>
    tpu.vector_store %arg10[%c0_281, %c0_282], %698 {strides = array<i32>} : memref<8x128xf32, #tpu.memory_space<vmem>>, vector<8x128xf32>,
    return
  }
  func.func @transform_0(%arg0: i32, %arg1: i32) -> (i32, i32) {
    %c1_i32 = arith.constant 1 : i32
    %0 = arith.muli %arg0, %c1_i32 : i32
    %1 = arith.addi %0, %arg1 : i32
    %c0_i32 = arith.constant 0 : i32
    %c0_i32_0 = arith.constant 0 : i32
    return %1, %c0_i32 : i32, i32
  }
  func.func @transform_1(%arg0: i32, %arg1: i32) -> (i32, i32) {
    %c0_i32 = arith.constant 0 : i32
    %c0_i32_0 = arith.constant 0 : i32
    %c0_i32_1 = arith.constant 0 : i32
    return %c0_i32, %c0_i32_0 : i32, i32
  }
  func.func @transform_2(%arg0: i32, %arg1: i32) -> (i32, i32) {
    %c0_i32 = arith.constant 0 : i32
    %c0_i32_0 = arith.constant 0 : i32
    %c0_i32_1 = arith.constant 0 : i32
    return %c0_i32, %c0_i32_0 : i32, i32
  }
  func.func @transform_3(%arg0: i32, %arg1: i32) -> (i32, i32) {
    %c0_i32 = arith.constant 0 : i32
    %c0_i32_0 = arith.constant 0 : i32
    %c0_i32_1 = arith.constant 0 : i32
    return %c0_i32, %c0_i32_0 : i32, i32
  }
  func.func @transform_4(%arg0: i32, %arg1: i32) -> (i32, i32) {
    %c0_i32 = arith.constant 0 : i32
    %c0_i32_0 = arith.constant 0 : i32
    %c0_i32_1 = arith.constant 0 : i32
    return %c0_i32, %c0_i32_0 : i32, i32
  }
  func.func @transform_5(%arg0: i32, %arg1: i32) -> (i32, i32) {
    %c1_i32 = arith.constant 1 : i32
    %0 = arith.muli %arg0, %c1_i32 : i32
    %1 = arith.addi %0, %arg1 : i32
    %c0_i32 = arith.constant 0 : i32
    %c0_i32_0 = arith.constant 0 : i32
    return %1, %c0_i32 : i32, i32
  }
  func.func @transform_6(%arg0: i32, %arg1: i32) -> (i32, i32) {
    %c1_i32 = arith.constant 1 : i32
    %0 = arith.muli %arg0, %c1_i32 : i32
    %1 = arith.addi %0, %arg1 : i32
    %c0_i32 = arith.constant 0 : i32
    %c0_i32_0 = arith.constant 0 : i32
    return %1, %c0_i32 : i32, i32
  }
}

</mosaic_0001>

<llo_original>
// kernel: snn_forward.1
$region0: #{snn_forward.1}
  #allocation0 [shape = 'u32[]', space=smem, size = 0x4, offset = 0x4, fixed_abs, tag = 'smem constant byte address 0x4 - core index']
  #allocation1 [shape = 'u32[144,128]{1,0:T(1,128)}', space=vmem, size = 0x12000, scoped, tag = 'internal scratch']
  #allocation2 [shape = 'f32[8,256]{1,0:T(8,128)}', space=vmem, size = 0x2000, scoped, tag = 'scratch operand']
  #allocation3 [shape = 'f32[8,128]{1,0:T(8,128)}', space=vmem, size = 0x1000, scoped, tag = 'scratch operand']
  #allocation4 [shape = 'f32[128,256]{1,0:T(8,128)}', space=vmem, size = 0x20000, scoped, tag = 'scratch operand']
  %s0 = inlined_call_operand.vmem [shape: f32[128,128], index: 0, kind: input, shape index: {}]
  %s1 = inlined_call_operand.vmem [shape: f32[128,256], index: 1, kind: input, shape index: {}]
  %s2 = inlined_call_operand.vmem [shape: f32[1,256], index: 2, kind: input, shape index: {}]
  %s3 = inlined_call_operand.vmem [shape: f32[256,128], index: 3, kind: input, shape index: {}]
  %s4 = inlined_call_operand.vmem [shape: f32[1,128], index: 4, kind: input, shape index: {}]
  %s5 = inlined_call_operand.vmem [shape: bf16[128,128], index: 5, kind: output, shape index: {0}]
  %s6 = inlined_call_operand.vmem [shape: f32[128,128], index: 6, kind: output, shape index: {1}]
  %7 = xla_tuple %s5, %s6
  %s8 = sld [smem:[#allocation0]]
  $region42: #{snn_forward.1} parent=0
    _
  %s10 = ssub.s32 1, %s8
  %s11 = scalar_select 0, %s10, %s8
  // Predicated region
  $region2: #{snn_forward.1} parent=0 // pred_check
    _
  $region3: #{snn_forward.1} parent=0 // pred_check_branch
    %13 = sbr.rel (0) target = $region5
  $region4: #{snn_forward.1} parent=0 // pred_region
    %s14 = sadd.s32 0, 0
    %s15 = smul.u32 16, %s14
    %p16 = scmp.lt.s32.totalorder %s15, 15
    %s17 = scalar_select %p16, %s15, 15
    %s18 = smul.addr %s17, 8
    %s19 = scalar_lea.vmem %s0, %s18
    %s20 = sadd.s32 0, 0
    %s21 = smul.u32 16, %s20
  $region5: #{snn_forward.1} parent=0 // pred_fallthru
    _
  // Predicated region
  $region6: #{snn_forward.1} parent=0 // pred_check
    _
  $region7: #{snn_forward.1} parent=0 // pred_check_branch
    %23 = sbr.rel (0) target = $region9
  $region8: #{snn_forward.1} parent=0 // pred_region
    _
  $region9: #{snn_forward.1} parent=0 // pred_fallthru
    _
  // Predicated region
  $region10: #{snn_forward.1} parent=0 // pred_check
    _
  $region11: #{snn_forward.1} parent=0 // pred_check_branch
    %25 = sbr.rel (0) target = $region13
  $region12: #{snn_forward.1} parent=0 // pred_region
    _
  $region13: #{snn_forward.1} parent=0 // pred_fallthru
    _
  // Predicated region
  $region14: #{snn_forward.1} parent=0 // pred_check
    _
  $region15: #{snn_forward.1} parent=0 // pred_check_branch
    %27 = sbr.rel (0) target = $region17
  $region16: #{snn_forward.1} parent=0 // pred_region
    _
  $region17: #{snn_forward.1} parent=0 // pred_fallthru
    _
  // Predicated region
  $region18: #{snn_forward.1} parent=0 // pred_check
    _
  $region19: #{snn_forward.1} parent=0 // pred_check_branch
    %29 = sbr.rel (0) target = $region21
  $region20: #{snn_forward.1} parent=0 // pred_region
    _
  $region21: #{snn_forward.1} parent=0 // pred_fallthru
    _
  %s30 = sadd.s32 0, 0
  %s31 = smul.u32 16, %s30
  %p32 = scmp.lt.s32.totalorder %s31, 15
  %s33 = scalar_select %p32, %s31, 15
  %s34 = smul.addr %s33, 8
  %s35 = scalar_lea.vmem %s0, %s34
  %s36 = sadd.s32 0, 0
  %s37 = smul.u32 16, %s36
  %p38 = scmp.lt.s32.totalorder %s37, 15
  %s39 = scalar_select %p38, %s37, 15
  %s40 = smul.addr %s39, 4
  %s41 = scalar_lea.vmem %s5, %s40
  %s42 = sadd.s32 0, 0
  %s43 = smul.u32 16, %s42
  %p44 = scmp.lt.s32.totalorder %s43, 15
  %s45 = scalar_select %p44, %s43, 15
  %s46 = smul.addr %s45, 8
  %s47 = scalar_lea.vmem %s6, %s46
  %s48 = sadd.s32 0, 0
  %s49 = smul.u32 16, %s48
  %p50 = scmp.lt.s32.totalorder %s49, 15
  %s51 = scalar_select %p50, %s49, 15
  %s52 = smul.addr %s51, 8
  %s53 = scalar_lea.vmem %s0, %s52
  %s54 = sadd.s32 0, 0
  %s55 = smul.u32 16, %s54
  %s56 = sadd.s32 0, 0
  %s57 = smul.u32 16, %s56
  %p58 = scmp.lt.s32.totalorder %s57, 15
  %s59 = scalar_select %p58, %s57, 15
  %s60 = smul.addr %s59, 4
  %s61 = scalar_lea.vmem %s5, %s60
  %s62 = sadd.s32 0, 0
  %s63 = smul.u32 16, %s62
  %s64 = sadd.s32 0, 0
  %s65 = smul.u32 16, %s64
  %p66 = scmp.lt.s32.totalorder %s65, 15
  %s67 = scalar_select %p66, %s65, 15
  %s68 = smul.addr %s67, 8
  %s69 = scalar_lea.vmem %s6, %s68
  %s70 = sadd.s32 0, 0
  %s71 = smul.u32 16, %s70
  %p72 = scmp.eq.s32.totalorder 0, 0
  // Predicated region
  $region22: #{snn_forward.1} parent=0 // pred_check
    %p73 = pneg %p72
  $region23: #{snn_forward.1} parent=0 // pred_check_branch
    %75 = sbr.rel (%p73) target = $region25
  $region24: #{snn_forward.1} parent=0 // pred_region
    %76 = vst [vmem:[#allocation2] sm:$0xff] 0.0
    %77 = vst [vmem:[#allocation2 + $0x8] sm:$0xff] 0.0
    %78 = vst [vmem:[#allocation3] sm:$0xff] 0.0
  $region25: #{snn_forward.1} parent=0 // pred_fallthru
    _
  %v79 = vld [vmem:[%s53] sm:$0xff]
  %v80 = vld [vmem:[%s53 + $0x8] sm:$0xff]
  %v81 = vld [vmem:[%s53 + $0x10] sm:$0xff]
  %v82 = vld [vmem:[%s53 + $0x18] sm:$0xff]
  %v83 = vld [vmem:[%s53 + $0x20] sm:$0xff]
  %v84 = vld [vmem:[%s53 + $0x28] sm:$0xff]
  %v85 = vld [vmem:[%s53 + $0x30] sm:$0xff]
  %v86 = vld [vmem:[%s53 + $0x38] sm:$0xff]
  %v87 = vld [vmem:[%s53 + $0x40] sm:$0xff]
  %v88 = vld [vmem:[%s53 + $0x48] sm:$0xff]
  %v89 = vld [vmem:[%s53 + $0x50] sm:$0xff]
  %v90 = vld [vmem:[%s53 + $0x58] sm:$0xff]
  %v91 = vld [vmem:[%s53 + $0x60] sm:$0xff]
  %v92 = vld [vmem:[%s53 + $0x68] sm:$0xff]
  %v93 = vld [vmem:[%s53 + $0x70] sm:$0xff]
  %v94 = vld [vmem:[%s53 + $0x78] sm:$0xff]
  %v95 = vld [vmem:[%s1] sm:$0xff]
  %v96 = vld [vmem:[%s1 + $0x8] sm:$0xff]
  %v97 = vld [vmem:[%s1 + $0x10] sm:$0xff]
  %v98 = vld [vmem:[%s1 + $0x18] sm:$0xff]
  %v99 = vld [vmem:[%s1 + $0x20] sm:$0xff]
  %v100 = vld [vmem:[%s1 + $0x28] sm:$0xff]
  %v101 = vld [vmem:[%s1 + $0x30] sm:$0xff]
  %v102 = vld [vmem:[%s1 + $0x38] sm:$0xff]
  %v103 = vld [vmem:[%s1 + $0x40] sm:$0xff]
  %v104 = vld [vmem:[%s1 + $0x48] sm:$0xff]
  %v105 = vld [vmem:[%s1 + $0x50] sm:$0xff]
  %v106 = vld [vmem:[%s1 + $0x58] sm:$0xff]
  %v107 = vld [vmem:[%s1 + $0x60] sm:$0xff]
  %v108 = vld [vmem:[%s1 + $0x68] sm:$0xff]
  %v109 = vld [vmem:[%s1 + $0x70] sm:$0xff]
  %v110 = vld [vmem:[%s1 + $0x78] sm:$0xff]
  %v111 = vld [vmem:[%s1 + $0x80] sm:$0xff]
  %v112 = vld [vmem:[%s1 + $0x88] sm:$0xff]
  %v113 = vld [vmem:[%s1 + $0x90] sm:$0xff]
  %v114 = vld [vmem:[%s1 + $0x98] sm:$0xff]
  %v115 = vld [vmem:[%s1 + $0xa0] sm:$0xff]
  %v116 = vld [vmem:[%s1 + $0xa8] sm:$0xff]
  %v117 = vld [vmem:[%s1 + $0xb0] sm:$0xff]
  %v118 = vld [vmem:[%s1 + $0xb8] sm:$0xff]
  %v119 = vld [vmem:[%s1 + $0xc0] sm:$0xff]
  %v120 = vld [vmem:[%s1 + $0xc8] sm:$0xff]
  %v121 = vld [vmem:[%s1 + $0xd0] sm:$0xff]
  %v122 = vld [vmem:[%s1 + $0xd8] sm:$0xff]
  %v123 = vld [vmem:[%s1 + $0xe0] sm:$0xff]
  %v124 = vld [vmem:[%s1 + $0xe8] sm:$0xff]
  %v125 = vld [vmem:[%s1 + $0xf0] sm:$0xff]
  %v126 = vld [vmem:[%s1 + $0xf8] sm:$0xff]
  %v127 = vld [vmem:[%s2] sm:$0x3]
  %v129 = vlaneseq
  %v130 = vshrl.u32 %v129, 7
  %v131 = vsub.s32 0, %v130
  %v132 = vrot.slane %v127, %v131
  %v133 = vlaneseq
  %v134 = vshrl.u32 %v133, 7
  %v135 = vsub.s32 1, %v134
  %v136 = vrot.slane %v127, %v135
  %139 = vmatprep.subr.mxu0 %v96
  %140 = vmatpush1.msra.mxu0 %v95
  %141 = vmatprep.subr.mxu0 %v98
  %142 = vmatpush1.msra.mxu0 %v97
  %143 = vmatprep.subr.mxu0 %v100
  %144 = vmatpush1.msra.mxu0 %v99
  %145 = vmatprep.subr.mxu0 %v102
  %146 = vmatpush1.msra.mxu0 %v101
  %147 = vmatprep.subr.mxu0 %v104
  %148 = vmatpush1.msra.mxu0 %v103
  %149 = vmatprep.subr.mxu0 %v106
  %150 = vmatpush1.msra.mxu0 %v105
  %151 = vmatprep.subr.mxu0 %v108
  %152 = vmatpush1.msra.mxu0 %v107
  %153 = vmatprep.subr.mxu0 %v110
  %154 = vmatpush1.msra.mxu0 %v109
  %155 = vmatprep.subr.mxu0 %v112
  %156 = vmatpush1.msra.mxu0 %v111
  %157 = vmatprep.subr.mxu0 %v114
  %158 = vmatpush1.msra.mxu0 %v113
  %159 = vmatprep.subr.mxu0 %v116
  %160 = vmatpush1.msra.mxu0 %v115
  %161 = vmatprep.subr.mxu0 %v118
  %162 = vmatpush1.msra.mxu0 %v117
  %163 = vmatprep.subr.mxu0 %v120
  %164 = vmatpush1.msra.mxu0 %v119
  %165 = vmatprep.subr.mxu0 %v122
  %166 = vmatpush1.msra.mxu0 %v121
  %167 = vmatprep.subr.mxu0 %v124
  %168 = vmatpush1.msra.mxu0 %v123
  %169 = vmatprep.subr.mxu0 %v126
  %170 = vmatpush1.msra.mxu0 %v125
  %171 = vmatprep.subr.mxu0 0.0
  %172 = vmatpush1.msra.mxu0 0.0
  %173 = vmatprep.subr.mxu0 0.0
  %174 = vmatpush1.msra.mxu0 0.0
  %175 = vmatprep.subr.mxu0 0.0
  %176 = vmatpush1.msra.mxu0 0.0
  %177 = vmatprep.subr.mxu0 0.0
  %178 = vmatpush1.msra.mxu0 0.0
  %179 = vmatprep.subr.mxu0 0.0
  %180 = vmatpush1.msra.mxu0 0.0
  %181 = vmatprep.subr.mxu0 0.0
  %182 = vmatpush1.msra.mxu0 0.0
  %183 = vmatprep.subr.mxu0 0.0
  %184 = vmatpush1.msra.mxu0 0.0
  %185 = vmatprep.subr.mxu0 0.0
  %186 = vmatpush1.msra.mxu0 0.0
  %187 = vmatprep.subr.mxu0 0.0
  %188 = vmatpush1.msra.mxu0 0.0
  %189 = vmatprep.subr.mxu0 0.0
  %190 = vmatpush1.msra.mxu0 0.0
  %191 = vmatprep.subr.mxu0 0.0
  %192 = vmatpush1.msra.mxu0 0.0
  %193 = vmatprep.subr.mxu0 0.0
  %194 = vmatpush1.msra.mxu0 0.0
  %195 = vmatprep.subr.mxu0 0.0
  %196 = vmatpush1.msra.mxu0 0.0
  %197 = vmatprep.subr.mxu0 0.0
  %198 = vmatpush1.msra.mxu0 0.0
  %199 = vmatprep.subr.mxu0 0.0
  %200 = vmatpush1.msra.mxu0 0.0
  %201 = vmatprep.subr.mxu0 0.0
  %202 = vmatpush1.msra.mxu0 0.0
  %203 = vmatprep.mubr.f32.mxu0 0.0
  %204 = vmatmul.mubr.f32.gmra.mrb[0].mxu0 %v79
  %v205 = vpop.f32.mrb[0].mxu0
  %v206 = vadd.f32 %v132, %v205
  %v207 = vpop.f32.mrb[0].mxu0
  %v208 = vadd.f32 %v136, %v207
  %209 = vmatprep.mubr.f32.mxu0 0.0
  %210 = vmatmul.mubr.f32.gmra.mrb[0].mxu0 %v80
  %v211 = vpop.f32.mrb[0].mxu0
  %v212 = vadd.f32 %v132, %v211
  %v213 = vpop.f32.mrb[0].mxu0
  %v214 = vadd.f32 %v136, %v213
  %215 = vmatprep.mubr.f32.mxu0 0.0
  %216 = vmatmul.mubr.f32.gmra.mrb[0].mxu0 %v81
  %v217 = vpop.f32.mrb[0].mxu0
  %v218 = vadd.f32 %v132, %v217
  %v219 = vpop.f32.mrb[0].mxu0
  %v220 = vadd.f32 %v136, %v219
  %221 = vmatprep.mubr.f32.mxu0 0.0
  %222 = vmatmul.mubr.f32.gmra.mrb[0].mxu0 %v82
  %v223 = vpop.f32.mrb[0].mxu0
  %v224 = vadd.f32 %v132, %v223
  %v225 = vpop.f32.mrb[0].mxu0
  %v226 = vadd.f32 %v136, %v225
  %227 = vmatprep.mubr.f32.mxu0 0.0
  %228 = vmatmul.mubr.f32.gmra.mrb[0].mxu0 %v83
  %v229 = vpop.f32.mrb[0].mxu0
  %v230 = vadd.f32 %v132, %v229
  %v231 = vpop.f32.mrb[0].mxu0
  %v232 = vadd.f32 %v136, %v231
  %233 = vmatprep.mubr.f32.mxu0 0.0
  %234 = vmatmul.mubr.f32.gmra.mrb[0].mxu0 %v84
  %v235 = vpop.f32.mrb[0].mxu0
  %v236 = vadd.f32 %v132, %v235
  %v237 = vpop.f32.mrb[0].mxu0
  %v238 = vadd.f32 %v136, %v237
  %239 = vmatprep.mubr.f32.mxu0 0.0
  %240 = vmatmul.mubr.f32.gmra.mrb[0].mxu0 %v85
  %v241 = vpop.f32.mrb[0].mxu0
  %v242 = vadd.f32 %v132, %v241
  %v243 = vpop.f32.mrb[0].mxu0
  %v244 = vadd.f32 %v136, %v243
  %245 = vmatprep.mubr.f32.mxu0 0.0
  %246 = vmatmul.mubr.f32.gmra.mrb[0].mxu0 %v86
  %v247 = vpop.f32.mrb[0].mxu0
  %v248 = vadd.f32 %v132, %v247
  %v249 = vpop.f32.mrb[0].mxu0
  %v250 = vadd.f32 %v136, %v249
  %251 = vmatprep.mubr.f32.mxu0 0.0
  %252 = vmatmul.mubr.f32.gmra.mrb[0].mxu0 %v87
  %v253 = vpop.f32.mrb[0].mxu0
  %v254 = vadd.f32 %v132, %v253
  %v255 = vpop.f32.mrb[0].mxu0
  %v256 = vadd.f32 %v136, %v255
  %257 = vmatprep.mubr.f32.mxu0 0.0
  %258 = vmatmul.mubr.f32.gmra.mrb[0].mxu0 %v88
  %v259 = vpop.f32.mrb[0].mxu0
  %v260 = vadd.f32 %v132, %v259
  %v261 = vpop.f32.mrb[0].mxu0
  %v262 = vadd.f32 %v136, %v261
  %263 = vmatprep.mubr.f32.mxu0 0.0
  %264 = vmatmul.mubr.f32.gmra.mrb[0].mxu0 %v89
  %v265 = vpop.f32.mrb[0].mxu0
  %v266 = vadd.f32 %v132, %v265
  %v267 = vpop.f32.mrb[0].mxu0
  %v268 = vadd.f32 %v136, %v267
  %269 = vmatprep.mubr.f32.mxu0 0.0
  %270 = vmatmul.mubr.f32.gmra.mrb[0].mxu0 %v90
  %v271 = vpop.f32.mrb[0].mxu0
  %v272 = vadd.f32 %v132, %v271
  %v273 = vpop.f32.mrb[0].mxu0
  %v274 = vadd.f32 %v136, %v273
  %275 = vmatprep.mubr.f32.mxu0 0.0
  %276 = vmatmul.mubr.f32.gmra.mrb[0].mxu0 %v91
  %v277 = vpop.f32.mrb[0].mxu0
  %v278 = vadd.f32 %v132, %v277
  %v279 = vpop.f32.mrb[0].mxu0
  %v280 = vadd.f32 %v136, %v279
  %281 = vmatprep.mubr.f32.mxu0 0.0
  %282 = vmatmul.mubr.f32.gmra.mrb[0].mxu0 %v92
  %v283 = vpop.f32.mrb[0].mxu0
  %v284 = vadd.f32 %v132, %v283
  %v285 = vpop.f32.mrb[0].mxu0
  %v286 = vadd.f32 %v136, %v285
  %287 = vmatprep.mubr.f32.mxu0 0.0
  %288 = vmatmul.mubr.f32.gmra.mrb[0].mxu0 %v93
  %v289 = vpop.f32.mrb[0].mxu0
  %v290 = vadd.f32 %v132, %v289
  %v291 = vpop.f32.mrb[0].mxu0
  %v292 = vadd.f32 %v136, %v291
  %293 = vmatprep.mubr.f32.mxu0 0.0
  %294 = vmatmul.mubr.f32.gmra.mrb[0].mxu0 %v94
  %v295 = vpop.f32.mrb[0].mxu0
  %v296 = vadd.f32 %v132, %v295
  %v297 = vpop.f32.mrb[0].mxu0
  %v298 = vadd.f32 %v136, %v297
  %299 = vdwg.mxu0
  %300 = vst [vmem:[#allocation4] sm:$0xff] %v206
  %301 = vst [vmem:[#allocation4 + $0x8] sm:$0xff] %v208
  %302 = vst [vmem:[#allocation4 + $0x10] sm:$0xff] %v212
  %303 = vst [vmem:[#allocation4 + $0x18] sm:$0xff] %v214
  %304 = vst [vmem:[#allocation4 + $0x20] sm:$0xff] %v218
  %305 = vst [vmem:[#allocation4 + $0x28] sm:$0xff] %v220
  %306 = vst [vmem:[#allocation4 + $0x30] sm:$0xff] %v224
  %307 = vst [vmem:[#allocation4 + $0x38] sm:$0xff] %v226
  %308 = vst [vmem:[#allocation4 + $0x40] sm:$0xff] %v230
  %309 = vst [vmem:[#allocation4 + $0x48] sm:$0xff] %v232
  %310 = vst [vmem:[#allocation4 + $0x50] sm:$0xff] %v236
  %311 = vst [vmem:[#allocation4 + $0x58] sm:$0xff] %v238
  %312 = vst [vmem:[#allocation4 + $0x60] sm:$0xff] %v242
  %313 = vst [vmem:[#allocation4 + $0x68] sm:$0xff] %v244
  %314 = vst [vmem:[#allocation4 + $0x70] sm:$0xff] %v248
  %315 = vst [vmem:[#allocation4 + $0x78] sm:$0xff] %v250
  %316 = vst [vmem:[#allocation4 + $0x80] sm:$0xff] %v254
  %317 = vst [vmem:[#allocation4 + $0x88] sm:$0xff] %v256
  %318 = vst [vmem:[#allocation4 + $0x90] sm:$0xff] %v260
  %319 = vst [vmem:[#allocation4 + $0x98] sm:$0xff] %v262
  %320 = vst [vmem:[#allocation4 + $0xa0] sm:$0xff] %v266
  %321 = vst [vmem:[#allocation4 + $0xa8] sm:$0xff] %v268
  %322 = vst [vmem:[#allocation4 + $0xb0] sm:$0xff] %v272
  %323 = vst [vmem:[#allocation4 + $0xb8] sm:$0xff] %v274
  %324 = vst [vmem:[#allocation4 + $0xc0] sm:$0xff] %v278
  %325 = vst [vmem:[#allocation4 + $0xc8] sm:$0xff] %v280
  %326 = vst [vmem:[#allocation4 + $0xd0] sm:$0xff] %v284
  %327 = vst [vmem:[#allocation4 + $0xd8] sm:$0xff] %v286
  %328 = vst [vmem:[#allocation4 + $0xe0] sm:$0xff] %v290
  %329 = vst [vmem:[#allocation4 + $0xe8] sm:$0xff] %v292
  %330 = vst [vmem:[#allocation4 + $0xf0] sm:$0xff] %v296
  %331 = vst [vmem:[#allocation4 + $0xf8] sm:$0xff] %v298
  %v332 = vld [vmem:[#allocation2] sm:$0xff]
  %v333 = vld [vmem:[#allocation2 + $0x8] sm:$0xff]
  %s334 = smul.u32 0, 2
  %s335 = smul.addr %s334, 8
  %s336 = scalar_lea.vmem [#allocation4], %s335
  %v337 = vld [vmem:[%s336] sm:$0xff]
  %v338 = vld [vmem:[%s336 + $0x8] sm:$0xff]
  %vm339 = vcmp.gt.f32.partialorder %v332, 1.0
  %vm340 = vcmp.gt.f32.partialorder %v333, 1.0
  %v341 = vsel %vm339, 1, 0
  %v342 = vsel %vm340, 1, 0
  %v343 = vcvt.s32.f32 %v341
  %v344 = vcvt.s32.f32 %v342
  %v345 = vmul.f32 %v332, 0.9
  %v346 = vmul.f32 %v333, 0.9
  %v347 = vadd.f32 %v345, %v337
  %v348 = vadd.f32 %v346, %v338
  %v349 = vsub.f32 %v347, %v343
  %v350 = vsub.f32 %v348, %v344
  %vm351 = vcmp.gt.f32.partialorder %v349, 1.0
  %vm352 = vcmp.gt.f32.partialorder %v350, 1.0
  %v353 = vsel %vm351, 1, 0
  %v354 = vsel %vm352, 1, 0
  %v355 = vcvt.s32.f32 %v353
  %v356 = vcvt.s32.f32 %v354
  %357 = vst [vmem:[%s336] sm:$0xff] %v355
  %358 = vst [vmem:[%s336 + $0x8] sm:$0xff] %v356
  %s359 = smul.u32 1, 2
  %s360 = smul.addr %s359, 8
  %s361 = scalar_lea.vmem [#allocation4], %s360
  %v362 = vld [vmem:[%s361] sm:$0xff]
  %v363 = vld [vmem:[%s361 + $0x8] sm:$0xff]
  %v364 = vmul.f32 %v349, 0.9
  %v365 = vmul.f32 %v350, 0.9
  %v366 = vadd.f32 %v364, %v362
  %v367 = vadd.f32 %v365, %v363
  %v368 = vsub.f32 %v366, %v355
  %v369 = vsub.f32 %v367, %v356
  %vm370 = vcmp.gt.f32.partialorder %v368, 1.0
  %vm371 = vcmp.gt.f32.partialorder %v369, 1.0
  %v372 = vsel %vm370, 1, 0
  %v373 = vsel %vm371, 1, 0
  %v374 = vcvt.s32.f32 %v372
  %v375 = vcvt.s32.f32 %v373
  %376 = vst [vmem:[%s361] sm:$0xff] %v374
  %377 = vst [vmem:[%s361 + $0x8] sm:$0xff] %v375
  %s378 = smul.u32 2, 2
  %s379 = smul.addr %s378, 8
  %s380 = scalar_lea.vmem [#allocation4], %s379
  %v381 = vld [vmem:[%s380] sm:$0xff]
  %v382 = vld [vmem:[%s380 + $0x8] sm:$0xff]
  %v383 = vmul.f32 %v368, 0.9
  %v384 = vmul.f32 %v369, 0.9
  %v385 = vadd.f32 %v383, %v381
  %v386 = vadd.f32 %v384, %v382
  %v387 = vsub.f32 %v385, %v374
  %v388 = vsub.f32 %v386, %v375
  %vm389 = vcmp.gt.f32.partialorder %v387, 1.0
  %vm390 = vcmp.gt.f32.partialorder %v388, 1.0
  %v391 = vsel %vm389, 1, 0
  %v392 = vsel %vm390, 1, 0
  %v393 = vcvt.s32.f32 %v391
  %v394 = vcvt.s32.f32 %v392
  %395 = vst [vmem:[%s380] sm:$0xff] %v393
  %396 = vst [vmem:[%s380 + $0x8] sm:$0xff] %v394
  %s397 = smul.u32 3, 2
  %s398 = smul.addr %s397, 8
  %s399 = scalar_lea.vmem [#allocation4], %s398
  %v400 = vld [vmem:[%s399] sm:$0xff]
  %v401 = vld [vmem:[%s399 + $0x8] sm:$0xff]
  %v402 = vmul.f32 %v387, 0.9
  %v403 = vmul.f32 %v388, 0.9
  %v404 = vadd.f32 %v402, %v400
  %v405 = vadd.f32 %v403, %v401
  %v406 = vsub.f32 %v404, %v393
  %v407 = vsub.f32 %v405, %v394
  %vm408 = vcmp.gt.f32.partialorder %v406, 1.0
  %vm409 = vcmp.gt.f32.partialorder %v407, 1.0
  %v410 = vsel %vm408, 1, 0
  %v411 = vsel %vm409, 1, 0
  %v412 = vcvt.s32.f32 %v410
  %v413 = vcvt.s32.f32 %v411
  %414 = vst [vmem:[%s399] sm:$0xff] %v412
  %415 = vst [vmem:[%s399 + $0x8] sm:$0xff] %v413
  %s416 = smul.u32 4, 2
  %s417 = smul.addr %s416, 8
  %s418 = scalar_lea.vmem [#allocation4], %s417
  %v419 = vld [vmem:[%s418] sm:$0xff]
  %v420 = vld [vmem:[%s418 + $0x8] sm:$0xff]
  %v421 = vmul.f32 %v406, 0.9
  %v422 = vmul.f32 %v407, 0.9
  %v423 = vadd.f32 %v421, %v419
  %v424 = vadd.f32 %v422, %v420
  %v425 = vsub.f32 %v423, %v412
  %v426 = vsub.f32 %v424, %v413
  %vm427 = vcmp.gt.f32.partialorder %v425, 1.0
  %vm428 = vcmp.gt.f32.partialorder %v426, 1.0
  %v429 = vsel %vm427, 1, 0
  %v430 = vsel %vm428, 1, 0
  %v431 = vcvt.s32.f32 %v429
  %v432 = vcvt.s32.f32 %v430
  %433 = vst [vmem:[%s418] sm:$0xff] %v431
  %434 = vst [vmem:[%s418 + $0x8] sm:$0xff] %v432
  %s435 = smul.u32 5, 2
  %s436 = smul.addr %s435, 8
  %s437 = scalar_lea.vmem [#allocation4], %s436
  %v438 = vld [vmem:[%s437] sm:$0xff]
  %v439 = vld [vmem:[%s437 + $0x8] sm:$0xff]
  %v440 = vmul.f32 %v425, 0.9
  %v441 = vmul.f32 %v426, 0.9
  %v442 = vadd.f32 %v440, %v438
  %v443 = vadd.f32 %v441, %v439
  %v444 = vsub.f32 %v442, %v431
  %v445 = vsub.f32 %v443, %v432
  %vm446 = vcmp.gt.f32.partialorder %v444, 1.0
  %vm447 = vcmp.gt.f32.partialorder %v445, 1.0
  %v448 = vsel %vm446, 1, 0
  %v449 = vsel %vm447, 1, 0
  %v450 = vcvt.s32.f32 %v448
  %v451 = vcvt.s32.f32 %v449
  %452 = vst [vmem:[%s437] sm:$0xff] %v450
  %453 = vst [vmem:[%s437 + $0x8] sm:$0xff] %v451
  %s454 = smul.u32 6, 2
  %s455 = smul.addr %s454, 8
  %s456 = scalar_lea.vmem [#allocation4], %s455
  %v457 = vld [vmem:[%s456] sm:$0xff]
  %v458 = vld [vmem:[%s456 + $0x8] sm:$0xff]
  %v459 = vmul.f32 %v444, 0.9
  %v460 = vmul.f32 %v445, 0.9
  %v461 = vadd.f32 %v459, %v457
  %v462 = vadd.f32 %v460, %v458
  %v463 = vsub.f32 %v461, %v450
  %v464 = vsub.f32 %v462, %v451
  %vm465 = vcmp.gt.f32.partialorder %v463, 1.0
  %vm466 = vcmp.gt.f32.partialorder %v464, 1.0
  %v467 = vsel %vm465, 1, 0
  %v468 = vsel %vm466, 1, 0
  %v469 = vcvt.s32.f32 %v467
  %v470 = vcvt.s32.f32 %v468
  %471 = vst [vmem:[%s456] sm:$0xff] %v469
  %472 = vst [vmem:[%s456 + $0x8] sm:$0xff] %v470
  %s473 = smul.u32 7, 2
  %s474 = smul.addr %s473, 8
  %s475 = scalar_lea.vmem [#allocation4], %s474
  %v476 = vld [vmem:[%s475] sm:$0xff]
  %v477 = vld [vmem:[%s475 + $0x8] sm:$0xff]
  %v478 = vmul.f32 %v463, 0.9
  %v479 = vmul.f32 %v464, 0.9
  %v480 = vadd.f32 %v478, %v476
  %v481 = vadd.f32 %v479, %v477
  %v482 = vsub.f32 %v480, %v469
  %v483 = vsub.f32 %v481, %v470
  %vm484 = vcmp.gt.f32.partialorder %v482, 1.0
  %vm485 = vcmp.gt.f32.partialorder %v483, 1.0
  %v486 = vsel %vm484, 1, 0
  %v487 = vsel %vm485, 1, 0
  %v488 = vcvt.s32.f32 %v486
  %v489 = vcvt.s32.f32 %v487
  %490 = vst [vmem:[%s475] sm:$0xff] %v488
  %491 = vst [vmem:[%s475 + $0x8] sm:$0xff] %v489
  %s492 = smul.u32 8, 2
  %s493 = smul.addr %s492, 8
  %s494 = scalar_lea.vmem [#allocation4], %s493
  %v495 = vld [vmem:[%s494] sm:$0xff]
  %v496 = vld [vmem:[%s494 + $0x8] sm:$0xff]
  %v497 = vmul.f32 %v482, 0.9
  %v498 = vmul.f32 %v483, 0.9
  %v499 = vadd.f32 %v497, %v495
  %v500 = vadd.f32 %v498, %v496
  %v501 = vsub.f32 %v499, %v488
  %v502 = vsub.f32 %v500, %v489
  %vm503 = vcmp.gt.f32.partialorder %v501, 1.0
  %vm504 = vcmp.gt.f32.partialorder %v502, 1.0
  %v505 = vsel %vm503, 1, 0
  %v506 = vsel %vm504, 1, 0
  %v507 = vcvt.s32.f32 %v505
  %v508 = vcvt.s32.f32 %v506
  %509 = vst [vmem:[%s494] sm:$0xff] %v507
  %510 = vst [vmem:[%s494 + $0x8] sm:$0xff] %v508
  %s511 = smul.u32 9, 2
  %s512 = smul.addr %s511, 8
  %s513 = scalar_lea.vmem [#allocation4], %s512
  %v514 = vld [vmem:[%s513] sm:$0xff]
  %v515 = vld [vmem:[%s513 + $0x8] sm:$0xff]
  %v516 = vmul.f32 %v501, 0.9
  %v517 = vmul.f32 %v502, 0.9
  %v518 = vadd.f32 %v516, %v514
  %v519 = vadd.f32 %v517, %v515
  %v520 = vsub.f32 %v518, %v507
  %v521 = vsub.f32 %v519, %v508
  %vm522 = vcmp.gt.f32.partialorder %v520, 1.0
  %vm523 = vcmp.gt.f32.partialorder %v521, 1.0
  %v524 = vsel %vm522, 1, 0
  %v525 = vsel %vm523, 1, 0
  %v526 = vcvt.s32.f32 %v524
  %v527 = vcvt.s32.f32 %v525
  %528 = vst [vmem:[%s513] sm:$0xff] %v526
  %529 = vst [vmem:[%s513 + $0x8] sm:$0xff] %v527
  %s530 = smul.u32 10, 2
  %s531 = smul.addr %s530, 8
  %s532 = scalar_lea.vmem [#allocation4], %s531
  %v533 = vld [vmem:[%s532] sm:$0xff]
  %v534 = vld [vmem:[%s532 + $0x8] sm:$0xff]
  %v535 = vmul.f32 %v520, 0.9
  %v536 = vmul.f32 %v521, 0.9
  %v537 = vadd.f32 %v535, %v533
  %v538 = vadd.f32 %v536, %v534
  %v539 = vsub.f32 %v537, %v526
  %v540 = vsub.f32 %v538, %v527
  %vm541 = vcmp.gt.f32.partialorder %v539, 1.0
  %vm542 = vcmp.gt.f32.partialorder %v540, 1.0
  %v543 = vsel %vm541, 1, 0
  %v544 = vsel %vm542, 1, 0
  %v545 = vcvt.s32.f32 %v543
  %v546 = vcvt.s32.f32 %v544
  %547 = vst [vmem:[%s532] sm:$0xff] %v545
  %548 = vst [vmem:[%s532 + $0x8] sm:$0xff] %v546
  %s549 = smul.u32 11, 2
  %s550 = smul.addr %s549, 8
  %s551 = scalar_lea.vmem [#allocation4], %s550
  %v552 = vld [vmem:[%s551] sm:$0xff]
  %v553 = vld [vmem:[%s551 + $0x8] sm:$0xff]
  %v554 = vmul.f32 %v539, 0.9
  %v555 = vmul.f32 %v540, 0.9
  %v556 = vadd.f32 %v554, %v552
  %v557 = vadd.f32 %v555, %v553
  %v558 = vsub.f32 %v556, %v545
  %v559 = vsub.f32 %v557, %v546
  %vm560 = vcmp.gt.f32.partialorder %v558, 1.0
  %vm561 = vcmp.gt.f32.partialorder %v559, 1.0
  %v562 = vsel %vm560, 1, 0
  %v563 = vsel %vm561, 1, 0
  %v564 = vcvt.s32.f32 %v562
  %v565 = vcvt.s32.f32 %v563
  %566 = vst [vmem:[%s551] sm:$0xff] %v564
  %567 = vst [vmem:[%s551 + $0x8] sm:$0xff] %v565
  %s568 = smul.u32 12, 2
  %s569 = smul.addr %s568, 8
  %s570 = scalar_lea.vmem [#allocation4], %s569
  %v571 = vld [vmem:[%s570] sm:$0xff]
  %v572 = vld [vmem:[%s570 + $0x8] sm:$0xff]
  %v573 = vmul.f32 %v558, 0.9
  %v574 = vmul.f32 %v559, 0.9
  %v575 = vadd.f32 %v573, %v571
  %v576 = vadd.f32 %v574, %v572
  %v577 = vsub.f32 %v575, %v564
  %v578 = vsub.f32 %v576, %v565
  %vm579 = vcmp.gt.f32.partialorder %v577, 1.0
  %vm580 = vcmp.gt.f32.partialorder %v578, 1.0
  %v581 = vsel %vm579, 1, 0
  %v582 = vsel %vm580, 1, 0
  %v583 = vcvt.s32.f32 %v581
  %v584 = vcvt.s32.f32 %v582
  %585 = vst [vmem:[%s570] sm:$0xff] %v583
  %586 = vst [vmem:[%s570 + $0x8] sm:$0xff] %v584
  %s587 = smul.u32 13, 2
  %s588 = smul.addr %s587, 8
  %s589 = scalar_lea.vmem [#allocation4], %s588
  %v590 = vld [vmem:[%s589] sm:$0xff]
  %v591 = vld [vmem:[%s589 + $0x8] sm:$0xff]
  %v592 = vmul.f32 %v577, 0.9
  %v593 = vmul.f32 %v578, 0.9
  %v594 = vadd.f32 %v592, %v590
  %v595 = vadd.f32 %v593, %v591
  %v596 = vsub.f32 %v594, %v583
  %v597 = vsub.f32 %v595, %v584
  %vm598 = vcmp.gt.f32.partialorder %v596, 1.0
  %vm599 = vcmp.gt.f32.partialorder %v597, 1.0
  %v600 = vsel %vm598, 1, 0
  %v601 = vsel %vm599, 1, 0
  %v602 = vcvt.s32.f32 %v600
  %v603 = vcvt.s32.f32 %v601
  %604 = vst [vmem:[%s589] sm:$0xff] %v602
  %605 = vst [vmem:[%s589 + $0x8] sm:$0xff] %v603
  %s606 = smul.u32 14, 2
  %s607 = smul.addr %s606, 8
  %s608 = scalar_lea.vmem [#allocation4], %s607
  %v609 = vld [vmem:[%s608] sm:$0xff]
  %v610 = vld [vmem:[%s608 + $0x8] sm:$0xff]
  %v611 = vmul.f32 %v596, 0.9
  %v612 = vmul.f32 %v597, 0.9
  %v613 = vadd.f32 %v611, %v609
  %v614 = vadd.f32 %v612, %v610
  %v615 = vsub.f32 %v613, %v602
  %v616 = vsub.f32 %v614, %v603
  %vm617 = vcmp.gt.f32.partialorder %v615, 1.0
  %vm618 = vcmp.gt.f32.partialorder %v616, 1.0
  %v619 = vsel %vm617, 1, 0
  %v620 = vsel %vm618, 1, 0
  %v621 = vcvt.s32.f32 %v619
  %v622 = vcvt.s32.f32 %v620
  %623 = vst [vmem:[%s608] sm:$0xff] %v621
  %624 = vst [vmem:[%s608 + $0x8] sm:$0xff] %v622
  %s625 = smul.u32 15, 2
  %s626 = smul.addr %s625, 8
  %s627 = scalar_lea.vmem [#allocation4], %s626
  %v628 = vld [vmem:[%s627] sm:$0xff]
  %v629 = vld [vmem:[%s627 + $0x8] sm:$0xff]
  %v630 = vmul.f32 %v615, 0.9
  %v631 = vmul.f32 %v616, 0.9
  %v632 = vadd.f32 %v630, %v628
  %v633 = vadd.f32 %v631, %v629
  %v634 = vsub.f32 %v632, %v621
  %v635 = vsub.f32 %v633, %v622
  %vm636 = vcmp.gt.f32.partialorder %v634, 1.0
  %vm637 = vcmp.gt.f32.partialorder %v635, 1.0
  %v638 = vsel %vm636, 1, 0
  %v639 = vsel %vm637, 1, 0
  %v640 = vcvt.s32.f32 %v638
  %v641 = vcvt.s32.f32 %v639
  %642 = vst [vmem:[%s627] sm:$0xff] %v640
  %643 = vst [vmem:[%s627 + $0x8] sm:$0xff] %v641
  %644 = vst [vmem:[#allocation2] sm:$0xff] %v634
  %645 = vst [vmem:[#allocation2 + $0x8] sm:$0xff] %v635
  %v646 = vld [vmem:[#allocation4] sm:$0xff]
  %v647 = vld [vmem:[#allocation4 + $0x8] sm:$0xff]
  %v648 = vld [vmem:[#allocation4 + $0x10] sm:$0xff]
  %v649 = vld [vmem:[#allocation4 + $0x18] sm:$0xff]
  %v650 = vld [vmem:[#allocation4 + $0x20] sm:$0xff]
  %v651 = vld [vmem:[#allocation4 + $0x28] sm:$0xff]
  %v652 = vld [vmem:[#allocation4 + $0x30] sm:$0xff]
  %v653 = vld [vmem:[#allocation4 + $0x38] sm:$0xff]
  %v654 = vld [vmem:[#allocation4 + $0x40] sm:$0xff]
  %v655 = vld [vmem:[#allocation4 + $0x48] sm:$0xff]
  %v656 = vld [vmem:[#allocation4 + $0x50] sm:$0xff]
  %v657 = vld [vmem:[#allocation4 + $0x58] sm:$0xff]
  %v658 = vld [vmem:[#allocation4 + $0x60] sm:$0xff]
  %v659 = vld [vmem:[#allocation4 + $0x68] sm:$0xff]
  %v660 = vld [vmem:[#allocation4 + $0x70] sm:$0xff]
  %v661 = vld [vmem:[#allocation4 + $0x78] sm:$0xff]
  %v662 = vld [vmem:[#allocation4 + $0x80] sm:$0xff]
  %v663 = vld [vmem:[#allocation4 + $0x88] sm:$0xff]
  %v664 = vld [vmem:[#allocation4 + $0x90] sm:$0xff]
  %v665 = vld [vmem:[#allocation4 + $0x98] sm:$0xff]
  %v666 = vld [vmem:[#allocation4 + $0xa0] sm:$0xff]
  %v667 = vld [vmem:[#allocation4 + $0xa8] sm:$0xff]
  %v668 = vld [vmem:[#allocation4 + $0xb0] sm:$0xff]
  %v669 = vld [vmem:[#allocation4 + $0xb8] sm:$0xff]
  %v670 = vld [vmem:[#allocation4 + $0xc0] sm:$0xff]
  %v671 = vld [vmem:[#allocation4 + $0xc8] sm:$0xff]
  %v672 = vld [vmem:[#allocation4 + $0xd0] sm:$0xff]
  %v673 = vld [vmem:[#allocation4 + $0xd8] sm:$0xff]
  %v674 = vld [vmem:[#allocation4 + $0xe0] sm:$0xff]
  %v675 = vld [vmem:[#allocation4 + $0xe8] sm:$0xff]
  %v676 = vld [vmem:[#allocation4 + $0xf0] sm:$0xff]
  %v677 = vld [vmem:[#allocation4 + $0xf8] sm:$0xff]
  %v678 = vld [vmem:[%s3] sm:$0xff]
  %v679 = vld [vmem:[%s3 + $0x8] sm:$0xff]
  %v680 = vld [vmem:[%s3 + $0x10] sm:$0xff]
  %v681 = vld [vmem:[%s3 + $0x18] sm:$0xff]
  %v682 = vld [vmem:[%s3 + $0x20] sm:$0xff]
  %v683 = vld [vmem:[%s3 + $0x28] sm:$0xff]
  %v684 = vld [vmem:[%s3 + $0x30] sm:$0xff]
  %v685 = vld [vmem:[%s3 + $0x38] sm:$0xff]
  %v686 = vld [vmem:[%s3 + $0x40] sm:$0xff]
  %v687 = vld [vmem:[%s3 + $0x48] sm:$0xff]
  %v688 = vld [vmem:[%s3 + $0x50] sm:$0xff]
  %v689 = vld [vmem:[%s3 + $0x58] sm:$0xff]
  %v690 = vld [vmem:[%s3 + $0x60] sm:$0xff]
  %v691 = vld [vmem:[%s3 + $0x68] sm:$0xff]
  %v692 = vld [vmem:[%s3 + $0x70] sm:$0xff]
  %v693 = vld [vmem:[%s3 + $0x78] sm:$0xff]
  %v694 = vld [vmem:[%s3 + $0x80] sm:$0xff]
  %v695 = vld [vmem:[%s3 + $0x88] sm:$0xff]
  %v696 = vld [vmem:[%s3 + $0x90] sm:$0xff]
  %v697 = vld [vmem:[%s3 + $0x98] sm:$0xff]
  %v698 = vld [vmem:[%s3 + $0xa0] sm:$0xff]
  %v699 = vld [vmem:[%s3 + $0xa8] sm:$0xff]
  %v700 = vld [vmem:[%s3 + $0xb0] sm:$0xff]
  %v701 = vld [vmem:[%s3 + $0xb8] sm:$0xff]
  %v702 = vld [vmem:[%s3 + $0xc0] sm:$0xff]
  %v703 = vld [vmem:[%s3 + $0xc8] sm:$0xff]
  %v704 = vld [vmem:[%s3 + $0xd0] sm:$0xff]
  %v705 = vld [vmem:[%s3 + $0xd8] sm:$0xff]
  %v706 = vld [vmem:[%s3 + $0xe0] sm:$0xff]
  %v707 = vld [vmem:[%s3 + $0xe8] sm:$0xff]
  %v708 = vld [vmem:[%s3 + $0xf0] sm:$0xff]
  %v709 = vld [vmem:[%s3 + $0xf8] sm:$0xff]
  %v710 = vld [vmem:[%s4] sm:$0x1]
  %v712 = vlaneseq
  %v713 = vshrl.u32 %v712, 7
  %v714 = vsub.s32 0, %v713
  %v715 = vrot.slane %v710, %v714
  %717 = vmatprep.subr.mxu0 0.0
  %718 = vmatpush1.msra.mxu0 %v678
  %719 = vmatprep.subr.mxu0 0.0
  %720 = vmatpush1.msra.mxu0 %v679
  %721 = vmatprep.subr.mxu0 0.0
  %722 = vmatpush1.msra.mxu0 %v680
  %723 = vmatprep.subr.mxu0 0.0
  %724 = vmatpush1.msra.mxu0 %v681
  %725 = vmatprep.subr.mxu0 0.0
  %726 = vmatpush1.msra.mxu0 %v682
  %727 = vmatprep.subr.mxu0 0.0
  %728 = vmatpush1.msra.mxu0 %v683
  %729 = vmatprep.subr.mxu0 0.0
  %730 = vmatpush1.msra.mxu0 %v684
  %731 = vmatprep.subr.mxu0 0.0
  %732 = vmatpush1.msra.mxu0 %v685
  %733 = vmatprep.subr.mxu0 0.0
  %734 = vmatpush1.msra.mxu0 %v686
  %735 = vmatprep.subr.mxu0 0.0
  %736 = vmatpush1.msra.mxu0 %v687
  %737 = vmatprep.subr.mxu0 0.0
  %738 = vmatpush1.msra.mxu0 %v688
  %739 = vmatprep.subr.mxu0 0.0
  %740 = vmatpush1.msra.mxu0 %v689
  %741 = vmatprep.subr.mxu0 0.0
  %742 = vmatpush1.msra.mxu0 %v690
  %743 = vmatprep.subr.mxu0 0.0
  %744 = vmatpush1.msra.mxu0 %v691
  %745 = vmatprep.subr.mxu0 0.0
  %746 = vmatpush1.msra.mxu0 %v692
  %747 = vmatprep.subr.mxu0 0.0
  %748 = vmatpush1.msra.mxu0 %v693
  %749 = vmatprep.subr.mxu0 0.0
  %750 = vmatpush1.msra.mxu0 %v694
  %751 = vmatprep.subr.mxu0 0.0
  %752 = vmatpush1.msra.mxu0 %v695
  %753 = vmatprep.subr.mxu0 0.0
  %754 = vmatpush1.msra.mxu0 %v696
  %755 = vmatprep.subr.mxu0 0.0
  %756 = vmatpush1.msra.mxu0 %v697
  %757 = vmatprep.subr.mxu0 0.0
  %758 = vmatpush1.msra.mxu0 %v698
  %759 = vmatprep.subr.mxu0 0.0
  %760 = vmatpush1.msra.mxu0 %v699
  %761 = vmatprep.subr.mxu0 0.0
  %762 = vmatpush1.msra.mxu0 %v700
  %763 = vmatprep.subr.mxu0 0.0
  %764 = vmatpush1.msra.mxu0 %v701
  %765 = vmatprep.subr.mxu0 0.0
  %766 = vmatpush1.msra.mxu0 %v702
  %767 = vmatprep.subr.mxu0 0.0
  %768 = vmatpush1.msra.mxu0 %v703
  %769 = vmatprep.subr.mxu0 0.0
  %770 = vmatpush1.msra.mxu0 %v704
  %771 = vmatprep.subr.mxu0 0.0
  %772 = vmatpush1.msra.mxu0 %v705
  %773 = vmatprep.subr.mxu0 0.0
  %774 = vmatpush1.msra.mxu0 %v706
  %775 = vmatprep.subr.mxu0 0.0
  %776 = vmatpush1.msra.mxu0 %v707
  %777 = vmatprep.subr.mxu0 0.0
  %778 = vmatpush1.msra.mxu0 %v708
  %779 = vmatprep.subr.mxu0 0.0
  %780 = vmatpush1.msra.mxu0 %v709
  %781 = vmatprep.mubr.f32.mxu0 %v647
  %782 = vmatmul.mubr.f32.gmra.mrb[0].mxu0 %v646
  %v783 = vpop.f32.mrb[0].mxu0
  %v784 = vadd.f32 %v715, %v783
  %v785 = vpop.f32.mrb[0].mxu0
  %786 = vmatprep.mubr.f32.mxu0 %v649
  %787 = vmatmul.mubr.f32.gmra.mrb[0].mxu0 %v648
  %v788 = vpop.f32.mrb[0].mxu0
  %v789 = vadd.f32 %v715, %v788
  %v790 = vpop.f32.mrb[0].mxu0
  %791 = vmatprep.mubr.f32.mxu0 %v651
  %792 = vmatmul.mubr.f32.gmra.mrb[0].mxu0 %v650
  %v793 = vpop.f32.mrb[0].mxu0
  %v794 = vadd.f32 %v715, %v793
  %v795 = vpop.f32.mrb[0].mxu0
  %796 = vmatprep.mubr.f32.mxu0 %v653
  %797 = vmatmul.mubr.f32.gmra.mrb[0].mxu0 %v652
  %v798 = vpop.f32.mrb[0].mxu0
  %v799 = vadd.f32 %v715, %v798
  %v800 = vpop.f32.mrb[0].mxu0
  %801 = vmatprep.mubr.f32.mxu0 %v655
  %802 = vmatmul.mubr.f32.gmra.mrb[0].mxu0 %v654
  %v803 = vpop.f32.mrb[0].mxu0
  %v804 = vadd.f32 %v715, %v803
  %v805 = vpop.f32.mrb[0].mxu0
  %806 = vmatprep.mubr.f32.mxu0 %v657
  %807 = vmatmul.mubr.f32.gmra.mrb[0].mxu0 %v656
  %v808 = vpop.f32.mrb[0].mxu0
  %v809 = vadd.f32 %v715, %v808
  %v810 = vpop.f32.mrb[0].mxu0
  %811 = vmatprep.mubr.f32.mxu0 %v659
  %812 = vmatmul.mubr.f32.gmra.mrb[0].mxu0 %v658
  %v813 = vpop.f32.mrb[0].mxu0
  %v814 = vadd.f32 %v715, %v813
  %v815 = vpop.f32.mrb[0].mxu0
  %816 = vmatprep.mubr.f32.mxu0 %v661
  %817 = vmatmul.mubr.f32.gmra.mrb[0].mxu0 %v660
  %v818 = vpop.f32.mrb[0].mxu0
  %v819 = vadd.f32 %v715, %v818
  %v820 = vpop.f32.mrb[0].mxu0
  %821 = vmatprep.mubr.f32.mxu0 %v663
  %822 = vmatmul.mubr.f32.gmra.mrb[0].mxu0 %v662
  %v823 = vpop.f32.mrb[0].mxu0
  %v824 = vadd.f32 %v715, %v823
  %v825 = vpop.f32.mrb[0].mxu0
  %826 = vmatprep.mubr.f32.mxu0 %v665
  %827 = vmatmul.mubr.f32.gmra.mrb[0].mxu0 %v664
  %v828 = vpop.f32.mrb[0].mxu0
  %v829 = vadd.f32 %v715, %v828
  %v830 = vpop.f32.mrb[0].mxu0
  %831 = vmatprep.mubr.f32.mxu0 %v667
  %832 = vmatmul.mubr.f32.gmra.mrb[0].mxu0 %v666
  %v833 = vpop.f32.mrb[0].mxu0
  %v834 = vadd.f32 %v715, %v833
  %v835 = vpop.f32.mrb[0].mxu0
  %836 = vmatprep.mubr.f32.mxu0 %v669
  %837 = vmatmul.mubr.f32.gmra.mrb[0].mxu0 %v668
  %v838 = vpop.f32.mrb[0].mxu0
  %v839 = vadd.f32 %v715, %v838
  %v840 = vpop.f32.mrb[0].mxu0
  %841 = vmatprep.mubr.f32.mxu0 %v671
  %842 = vmatmul.mubr.f32.gmra.mrb[0].mxu0 %v670
  %v843 = vpop.f32.mrb[0].mxu0
  %v844 = vadd.f32 %v715, %v843
  %v845 = vpop.f32.mrb[0].mxu0
  %846 = vmatprep.mubr.f32.mxu0 %v673
  %847 = vmatmul.mubr.f32.gmra.mrb[0].mxu0 %v672
  %v848 = vpop.f32.mrb[0].mxu0
  %v849 = vadd.f32 %v715, %v848
  %v850 = vpop.f32.mrb[0].mxu0
  %851 = vmatprep.mubr.f32.mxu0 %v675
  %852 = vmatmul.mubr.f32.gmra.mrb[0].mxu0 %v674
  %v853 = vpop.f32.mrb[0].mxu0
  %v854 = vadd.f32 %v715, %v853
  %v855 = vpop.f32.mrb[0].mxu0
  %856 = vmatprep.mubr.f32.mxu0 %v677
  %857 = vmatmul.mubr.f32.gmra.mrb[0].mxu0 %v676
  %v858 = vpop.f32.mrb[0].mxu0
  %v859 = vadd.f32 %v715, %v858
  %v860 = vpop.f32.mrb[0].mxu0
  %861 = vdwg.mxu0
  %862 = vst [vmem:[%s69] sm:$0xff] %v784
  %863 = vst [vmem:[%s69 + $0x8] sm:$0xff] %v789
  %864 = vst [vmem:[%s69 + $0x10] sm:$0xff] %v794
  %865 = vst [vmem:[%s69 + $0x18] sm:$0xff] %v799
  %866 = vst [vmem:[%s69 + $0x20] sm:$0xff] %v804
  %867 = vst [vmem:[%s69 + $0x28] sm:$0xff] %v809
  %868 = vst [vmem:[%s69 + $0x30] sm:$0xff] %v814
  %869 = vst [vmem:[%s69 + $0x38] sm:$0xff] %v819
  %870 = vst [vmem:[%s69 + $0x40] sm:$0xff] %v824
  %871 = vst [vmem:[%s69 + $0x48] sm:$0xff] %v829
  %872 = vst [vmem:[%s69 + $0x50] sm:$0xff] %v834
  %873 = vst [vmem:[%s69 + $0x58] sm:$0xff] %v839
  %874 = vst [vmem:[%s69 + $0x60] sm:$0xff] %v844
  %875 = vst [vmem:[%s69 + $0x68] sm:$0xff] %v849
  %876 = vst [vmem:[%s69 + $0x70] sm:$0xff] %v854
  %877 = vst [vmem:[%s69 + $0x78] sm:$0xff] %v859
  %v878 = vld [vmem:[#allocation3] sm:$0xff]
  %v879 = vld [vmem:[%s69] sm:$0xff]
  %vm880 = vcmp.gt.f32.partialorder %v878, 1.0
  %v881 = vsel %vm880, 1, 0
  %v882 = vcvt.s32.f32 %v881
  %v883 = vmul.f32 %v878, 0.9
  %v884 = vadd.f32 %v883, %v879
  %v885 = vsub.f32 %v884, %v882
  %vm886 = vcmp.gt.f32.partialorder %v885, 1.0
  %887 = vst [vmem:[%s69] sm:$0xff] %v885
  %v888 = vsel %vm886, 1, 0
  %v889 = vcvt.s32.f32 %v888
  %v890 = vpack.c.bf16 %v889, %v889
  %891 = vst [vmem:[%s61] sm:$0xf] %v890
  %s892 = scalar_lea.vmem %s69, 8
  %v893 = vld [vmem:[%s892] sm:$0xff]
  %v894 = vmul.f32 %v885, 0.9
  %v895 = vadd.f32 %v894, %v893
  %v896 = vsub.f32 %v895, %v889
  %vm897 = vcmp.gt.f32.partialorder %v896, 1.0
  %898 = vst [vmem:[%s892] sm:$0xff] %v896
  %v899 = vsel %vm897, 1, 0
  %v900 = vcvt.s32.f32 %v899
  %v901 = vpack.c.bf16 %v900, %v900
  %s902 = scalar_lea.vmem %s61, 4
  %903 = vst [vmem:[%s902] sm:$0xf] %v901
  %s904 = scalar_lea.vmem %s69, 16
  %v905 = vld [vmem:[%s904] sm:$0xff]
  %v906 = vmul.f32 %v896, 0.9
  %v907 = vadd.f32 %v906, %v905
  %v908 = vsub.f32 %v907, %v900
  %vm909 = vcmp.gt.f32.partialorder %v908, 1.0
  %910 = vst [vmem:[%s904] sm:$0xff] %v908
  %v911 = vsel %vm909, 1, 0
  %v912 = vcvt.s32.f32 %v911
  %v913 = vpack.c.bf16 %v912, %v912
  %s914 = scalar_lea.vmem %s61, 8
  %915 = vst [vmem:[%s914] sm:$0xf] %v913
  %s916 = scalar_lea.vmem %s69, 24
  %v917 = vld [vmem:[%s916] sm:$0xff]
  %v918 = vmul.f32 %v908, 0.9
  %v919 = vadd.f32 %v918, %v917
  %v920 = vsub.f32 %v919, %v912
  %vm921 = vcmp.gt.f32.partialorder %v920, 1.0
  %922 = vst [vmem:[%s916] sm:$0xff] %v920
  %v923 = vsel %vm921, 1, 0
  %v924 = vcvt.s32.f32 %v923
  %v925 = vpack.c.bf16 %v924, %v924
  %s926 = scalar_lea.vmem %s61, 12
  %927 = vst [vmem:[%s926] sm:$0xf] %v925
  %s928 = scalar_lea.vmem %s69, 32
  %v929 = vld [vmem:[%s928] sm:$0xff]
  %v930 = vmul.f32 %v920, 0.9
  %v931 = vadd.f32 %v930, %v929
  %v932 = vsub.f32 %v931, %v924
  %vm933 = vcmp.gt.f32.partialorder %v932, 1.0
  %934 = vst [vmem:[%s928] sm:$0xff] %v932
  %v935 = vsel %vm933, 1, 0
  %v936 = vcvt.s32.f32 %v935
  %v937 = vpack.c.bf16 %v936, %v936
  %s938 = scalar_lea.vmem %s61, 16
  %939 = vst [vmem:[%s938] sm:$0xf] %v937
  %s940 = scalar_lea.vmem %s69, 40
  %v941 = vld [vmem:[%s940] sm:$0xff]
  %v942 = vmul.f32 %v932, 0.9
  %v943 = vadd.f32 %v942, %v941
  %v944 = vsub.f32 %v943, %v936
  %vm945 = vcmp.gt.f32.partialorder %v944, 1.0
  %946 = vst [vmem:[%s940] sm:$0xff] %v944
  %v947 = vsel %vm945, 1, 0
  %v948 = vcvt.s32.f32 %v947
  %v949 = vpack.c.bf16 %v948, %v948
  %s950 = scalar_lea.vmem %s61, 20
  %951 = vst [vmem:[%s950] sm:$0xf] %v949
  %s952 = scalar_lea.vmem %s69, 48
  %v953 = vld [vmem:[%s952] sm:$0xff]
  %v954 = vmul.f32 %v944, 0.9
  %v955 = vadd.f32 %v954, %v953
  %v956 = vsub.f32 %v955, %v948
  %vm957 = vcmp.gt.f32.partialorder %v956, 1.0
  %958 = vst [vmem:[%s952] sm:$0xff] %v956
  %v959 = vsel %vm957, 1, 0
  %v960 = vcvt.s32.f32 %v959
  %v961 = vpack.c.bf16 %v960, %v960
  %s962 = scalar_lea.vmem %s61, 24
  %963 = vst [vmem:[%s962] sm:$0xf] %v961
  %s964 = scalar_lea.vmem %s69, 56
  %v965 = vld [vmem:[%s964] sm:$0xff]
  %v966 = vmul.f32 %v956, 0.9
  %v967 = vadd.f32 %v966, %v965
  %v968 = vsub.f32 %v967, %v960
  %vm969 = vcmp.gt.f32.partialorder %v968, 1.0
  %970 = vst [vmem:[%s964] sm:$0xff] %v968
  %v971 = vsel %vm969, 1, 0
  %v972 = vcvt.s32.f32 %v971
  %v973 = vpack.c.bf16 %v972, %v972
  %s974 = scalar_lea.vmem %s61, 28
  %975 = vst [vmem:[%s974] sm:$0xf] %v973
  %s976 = scalar_lea.vmem %s69, 64
  %v977 = vld [vmem:[%s976] sm:$0xff]
  %v978 = vmul.f32 %v968, 0.9
  %v979 = vadd.f32 %v978, %v977
  %v980 = vsub.f32 %v979, %v972
  %vm981 = vcmp.gt.f32.partialorder %v980, 1.0
  %982 = vst [vmem:[%s976] sm:$0xff] %v980
  %v983 = vsel %vm981, 1, 0
  %v984 = vcvt.s32.f32 %v983
  %v985 = vpack.c.bf16 %v984, %v984
  %s986 = scalar_lea.vmem %s61, 32
  %987 = vst [vmem:[%s986] sm:$0xf] %v985
  %s988 = scalar_lea.vmem %s69, 72
  %v989 = vld [vmem:[%s988] sm:$0xff]
  %v990 = vmul.f32 %v980, 0.9
  %v991 = vadd.f32 %v990, %v989
  %v992 = vsub.f32 %v991, %v984
  %vm993 = vcmp.gt.f32.partialorder %v992, 1.0
  %994 = vst [vmem:[%s988] sm:$0xff] %v992
  %v995 = vsel %vm993, 1, 0
  %v996 = vcvt.s32.f32 %v995
  %v997 = vpack.c.bf16 %v996, %v996
  %s998 = scalar_lea.vmem %s61, 36
  %999 = vst [vmem:[%s998] sm:$0xf] %v997
  %s1000 = scalar_lea.vmem %s69, 80
  %v1001 = vld [vmem:[%s1000] sm:$0xff]
  %v1002 = vmul.f32 %v992, 0.9
  %v1003 = vadd.f32 %v1002, %v1001
  %v1004 = vsub.f32 %v1003, %v996
  %vm1005 = vcmp.gt.f32.partialorder %v1004, 1.0
  %1006 = vst [vmem:[%s1000] sm:$0xff] %v1004
  %v1007 = vsel %vm1005, 1, 0
  %v1008 = vcvt.s32.f32 %v1007
  %v1009 = vpack.c.bf16 %v1008, %v1008
  %s1010 = scalar_lea.vmem %s61, 40
  %1011 = vst [vmem:[%s1010] sm:$0xf] %v1009
  %s1012 = scalar_lea.vmem %s69, 88
  %v1013 = vld [vmem:[%s1012] sm:$0xff]
  %v1014 = vmul.f32 %v1004, 0.9
  %v1015 = vadd.f32 %v1014, %v1013
  %v1016 = vsub.f32 %v1015, %v1008
  %vm1017 = vcmp.gt.f32.partialorder %v1016, 1.0
  %1018 = vst [vmem:[%s1012] sm:$0xff] %v1016
  %v1019 = vsel %vm1017, 1, 0
  %v1020 = vcvt.s32.f32 %v1019
  %v1021 = vpack.c.bf16 %v1020, %v1020
  %s1022 = scalar_lea.vmem %s61, 44
  %1023 = vst [vmem:[%s1022] sm:$0xf] %v1021
  %s1024 = scalar_lea.vmem %s69, 96
  %v1025 = vld [vmem:[%s1024] sm:$0xff]
  %v1026 = vmul.f32 %v1016, 0.9
  %v1027 = vadd.f32 %v1026, %v1025
  %v1028 = vsub.f32 %v1027, %v1020
  %vm1029 = vcmp.gt.f32.partialorder %v1028, 1.0
  %1030 = vst [vmem:[%s1024] sm:$0xff] %v1028
  %v1031 = vsel %vm1029, 1, 0
  %v1032 = vcvt.s32.f32 %v1031
  %v1033 = vpack.c.bf16 %v1032, %v1032
  %s1034 = scalar_lea.vmem %s61, 48
  %1035 = vst [vmem:[%s1034] sm:$0xf] %v1033
  %s1036 = scalar_lea.vmem %s69, 104
  %v1037 = vld [vmem:[%s1036] sm:$0xff]
  %v1038 = vmul.f32 %v1028, 0.9
  %v1039 = vadd.f32 %v1038, %v1037
  %v1040 = vsub.f32 %v1039, %v1032
  %vm1041 = vcmp.gt.f32.partialorder %v1040, 1.0
  %1042 = vst [vmem:[%s1036] sm:$0xff] %v1040
  %v1043 = vsel %vm1041, 1, 0
  %v1044 = vcvt.s32.f32 %v1043
  %v1045 = vpack.c.bf16 %v1044, %v1044
  %s1046 = scalar_lea.vmem %s61, 52
  %1047 = vst [vmem:[%s1046] sm:$0xf] %v1045
  %s1048 = scalar_lea.vmem %s69, 112
  %v1049 = vld [vmem:[%s1048] sm:$0xff]
  %v1050 = vmul.f32 %v1040, 0.9
  %v1051 = vadd.f32 %v1050, %v1049
  %v1052 = vsub.f32 %v1051, %v1044
  %vm1053 = vcmp.gt.f32.partialorder %v1052, 1.0
  %1054 = vst [vmem:[%s1048] sm:$0xff] %v1052
  %v1055 = vsel %vm1053, 1, 0
  %v1056 = vcvt.s32.f32 %v1055
  %v1057 = vpack.c.bf16 %v1056, %v1056
  %s1058 = scalar_lea.vmem %s61, 56
  %1059 = vst [vmem:[%s1058] sm:$0xf] %v1057
  %s1060 = scalar_lea.vmem %s69, 120
  %v1061 = vld [vmem:[%s1060] sm:$0xff]
  %v1062 = vmul.f32 %v1052, 0.9
  %v1063 = vadd.f32 %v1062, %v1061
  %v1064 = vsub.f32 %v1063, %v1056
  %vm1065 = vcmp.gt.f32.partialorder %v1064, 1.0
  %1066 = vst [vmem:[%s1060] sm:$0xff] %v1064
  %v1067 = vsel %vm1065, 1, 0
  %v1068 = vcvt.s32.f32 %v1067
  %v1069 = vpack.c.bf16 %v1068, %v1068
  %s1070 = scalar_lea.vmem %s61, 60
  %1071 = vst [vmem:[%s1070] sm:$0xf] %v1069
  %1072 = vst [vmem:[#allocation3] sm:$0xff] %v1064
  %s1073 = sadd.s32 0, 0
  %s1074 = smul.u32 16, %s1073
  %p1075 = scmp.lt.s32.totalorder %s1074, 15
  %s1076 = scalar_select %p1075, %s1074, 15
  %s1077 = smul.addr %s1076, 4
  %s1078 = scalar_lea.vmem %s5, %s1077
  %s1079 = sadd.s32 0, 0
  %s1080 = smul.u32 16, %s1079
  %p1081 = scmp.lt.s32.totalorder %s1080, 15
  %s1082 = scalar_select %p1081, %s1080, 15
  %s1083 = smul.addr %s1082, 8
  %s1084 = scalar_lea.vmem %s6, %s1083
  // Predicated region
  $region26: #{snn_forward.1} parent=0 // pred_check
    _
  $region27: #{snn_forward.1} parent=0 // pred_check_branch
    %1086 = sbr.rel (0) target = $region29
  $region28: #{snn_forward.1} parent=0 // pred_region
    %s1087 = sadd.s32 0, 0
    %s1088 = smul.u32 16, %s1087
  $region29: #{snn_forward.1} parent=0 // pred_fallthru
    _
  // Predicated region
  $region30: #{snn_forward.1} parent=0 // pred_check
    _
  $region31: #{snn_forward.1} parent=0 // pred_check_branch
    %1090 = sbr.rel (0) target = $region33
  $region32: #{snn_forward.1} parent=0 // pred_region
    %s1091 = sadd.s32 0, 0
    %s1092 = smul.u32 16, %s1091
  $region33: #{snn_forward.1} parent=0 // pred_fallthru
    _
  // Predicated region
  $region34: #{snn_forward.1} parent=0 // pred_check
    _
  $region35: #{snn_forward.1} parent=0 // pred_check_branch
    %1094 = sbr.rel (0) target = $region37
  $region36: #{snn_forward.1} parent=0 // pred_region
    %s1095 = sadd.s32 0, 0
    %s1096 = smul.u32 16, %s1095
    %p1097 = scmp.lt.s32.totalorder %s1096, 15
    %s1098 = scalar_select %p1097, %s1096, 15
    %s1099 = smul.addr %s1098, 4
    %s1100 = scalar_lea.vmem %s5, %s1099
  $region37: #{snn_forward.1} parent=0 // pred_fallthru
    _
  // Predicated region
  $region38: #{snn_forward.1} parent=0 // pred_check
    _
  $region39: #{snn_forward.1} parent=0 // pred_check_branch
    %1102 = sbr.rel (0) target = $region41
  $region40: #{snn_forward.1} parent=0 // pred_region
    %s1103 = sadd.s32 0, 0
    %s1104 = smul.u32 16, %s1103
    %p1105 = scmp.lt.s32.totalorder %s1104, 15
    %s1106 = scalar_select %p1105, %s1104, 15
    %s1107 = smul.addr %s1106, 8
    %s1108 = scalar_lea.vmem %s6, %s1107
  $region41: #{snn_forward.1} parent=0 // pred_fallthru
    _

</llo_original>
